<compile_context>
chip_gen: v5e
topology: v5e:2x2
jax: 0.10.0
libtpu: 0.0.40
codegen_flags: <defaults>
</compile_context>

<pallas_src>
import functools
import math

import jax
import jax.numpy as jnp
import numpy as np
from jax.experimental import pallas as pl
from jax.experimental.pallas import tpu as pltpu


def _perceiver_attn_kernel(x_ref, lat_ref, bias_ref,
                           ln1g_ref, ln1b_ref, ln2g_ref, ln2b_ref,
                           wqkv_ref, wo_ref,
                           out_ref,
                           *, heads, dim_head, eps):
    f32 = jnp.float32
    bf16 = jnp.bfloat16

    x = x_ref[...].astype(f32)        # (bt, n1, D)
    lat = lat_ref[...].astype(f32)    # (bt, n2, D)
    bias = bias_ref[...].astype(f32)  # (bt, 1, n1+n2), values in {0, -100}
    bt, n1, D = x.shape
    n2 = lat.shape[1]
    n = n1 + n2
    g = bt * heads
    inner = heads * dim_head

    def layernorm(t, gamma, beta):
        mu = jnp.mean(t, axis=-1, keepdims=True)
        var = jnp.mean((t - mu) * (t - mu), axis=-1, keepdims=True)
        return (t - mu) * jax.lax.rsqrt(var + eps) * gamma + beta

    xn = layernorm(x, ln1g_ref[...].astype(f32), ln1b_ref[...].astype(f32))
    latn = layernorm(lat, ln2g_ref[...].astype(f32), ln2b_ref[...].astype(f32))

    # Shared projection input built directly from bf16 pieces (no f32 temp).
    kv_in = jnp.concatenate([xn.astype(bf16), latn.astype(bf16)], axis=1)  # (bt, n, D)

    # ONE fused lane-dense QKV matmul: (bt*n, D) @ (D, 3*inner), f32 acc.
    qkv = jnp.dot(kv_in.reshape(bt * n, D), wqkv_ref[...],
                  preferred_element_type=f32)                # (bt*n, 3*inner)
    qkv = qkv.reshape(bt, n, 3 * inner)

    # 128-aligned lane slices; q only needs the latent rows (sublane offset n1
    # is a multiple of 8).  Scale dim_head**-0.5 already folded into wqkv's q
    # columns wrapper-side.
    q2 = qkv[:, n1:, :inner]                 # (bt, n2, inner)
    k2 = qkv[:, :, inner:2 * inner]          # (bt, n,  inner)
    v2 = qkv[:, :, 2 * inner:]               # (bt, n,  inner)

    def to_heads(t):                         # (bt, L, inner) -> (g, L, dh) bf16
        L = t.shape[1]
        t = t.reshape(bt, L, heads, dim_head)
        t = jnp.transpose(t, (0, 2, 1, 3))   # (bt, heads, L, dh)
        return t.reshape(g, L, dim_head).astype(bf16)

    q = to_heads(q2)
    k = to_heads(k2)
    v = to_heads(v2)

    # Scores for all heads/batches at once; additive mask bias; f32 softmax.
    s = jnp.einsum("gqc,gkc->gqk", q, k, preferred_element_type=f32)   # (g, n2, n)
    s4 = s.reshape(bt, heads, n2, n) + bias[:, :, None, :]             # bcast h, q
    s4 = s4 - jnp.max(s4, axis=-1, keepdims=True)
    p4 = jnp.exp(s4)
    p4 = p4 * pl.reciprocal(jnp.sum(p4, axis=-1, keepdims=True), approx=True)
    p = p4.reshape(g, n2, n).astype(bf16)

    o = jnp.einsum("gqk,gkc->gqc", p, v, preferred_element_type=f32)   # (g, n2, dh)

    # Head combine: one transpose to (bt, n2, heads, dh) (head-major lane order
    # == PyTorch permute+reshape), contiguous reshape, ONE K=inner matmul, and
    # a single lane-dense store of the whole (bt*n2, D) block.
    o = jnp.transpose(o.reshape(bt, heads, n2, dim_head), (0, 2, 1, 3))
    o_flat = o.reshape(bt * n2, inner).astype(bf16)
    out = jnp.dot(o_flat, wo_ref[...], preferred_element_type=f32)     # (bt*n2, D)
    out_ref[...] = out.astype(out_ref.dtype)


@functools.partial(jax.jit, static_argnames=("heads", "dim_head", "batch_tile"))
def perceiver_attention(x, latents, attention_mask, params, *, heads, dim_head,
                        batch_tile=None):
    b, n1, D = x.shape
    _, n2, _ = latents.shape
    inner = heads * dim_head
    n = n1 + n2

    # batch_tile=None -> fuse the whole batch into one grid step (v5e/v6e,
    # single TensorCore).  On v7x use batch_tile=b//2 so the 2-way "parallel"
    # grid axis occupies both TensorCores.
    bt = b if batch_tile is None else batch_tile
    assert b % bt == 0, "batch must be divisible by batch_tile"

    # Additive attention bias (b, 1, n1+n2): concat(mask^T, ones(n2)); (m-1)*100.
    mask_t = jnp.transpose(attention_mask.astype(jnp.float32), (0, 2, 1))  # (b,1,n1)
    bias = (jnp.concatenate([mask_t, jnp.ones((b, 1, n2), jnp.float32)],
                            axis=-1) - 1.0) * 100.0

    # Fused QKV weight (D, 3*inner), bf16, with the dim_head**-0.5 score scale
    # folded into the q columns (one-time constant fold on static weights).
    wq_scaled = params["wq_t"] * (dim_head ** -0.5)
    wqkv = jnp.concatenate([wq_scaled, params["wkv_t"]],
                           axis=1).astype(jnp.bfloat16)                # (D, 3*inner)
    wo = params["wo_t"].astype(jnp.bfloat16)                           # (inner, D)

    kernel = functools.partial(_perceiver_attn_kernel,
                               heads=heads, dim_head=dim_head, eps=1e-5)

    # NOTE: at real token counts on v7x, set vmem_limit_bytes explicitly and
    # re-budget bt (the f32 score slab scales as b*heads*n2*(n1+n2)*4 B).
    out_flat = pl.pallas_call(
        kernel,
        out_shape=jax.ShapeDtypeStruct((b * n2, D), x.dtype),
        grid=(b // bt,),
        in_specs=[
            pl.BlockSpec((bt, n1, D), lambda i: (i, 0, 0)),           # x
            pl.BlockSpec((bt, n2, D), lambda i: (i, 0, 0)),           # latents
            pl.BlockSpec((bt, 1, n), lambda i: (i, 0, 0)),            # mask bias
            pl.BlockSpec((1, D), lambda i: (0, 0)),                   # ln1 gamma
            pl.BlockSpec((1, D), lambda i: (0, 0)),                   # ln1 beta
            pl.BlockSpec((1, D), lambda i: (0, 0)),                   # ln2 gamma
            pl.BlockSpec((1, D), lambda i: (0, 0)),                   # ln2 beta
            pl.BlockSpec((D, 3 * inner), lambda i: (0, 0)),           # Wqkv fused
            pl.BlockSpec((inner, D), lambda i: (0, 0)),               # Wo
        ],
        out_specs=pl.BlockSpec((bt * n2, D), lambda i: (i, 0)),
        compiler_params=pltpu.CompilerParams(
            dimension_semantics=("parallel",)),
    )(x, latents, bias,
      params["ln1_g"], params["ln1_b"], params["ln2_g"], params["ln2_b"],
      wqkv, wo)

    return out_flat.reshape(b, n2, D)


# ---------------------------------------------------------------------------
# References for validation
# ---------------------------------------------------------------------------
def reference_f32(x, latents, mask, params, heads, dim_head):
    """Pure-f32 JAX port of the PyTorch forward (loose sanity reference)."""
    def ln(t, g, b):
        mu = jnp.mean(t, -1, keepdims=True)
        var = jnp.mean((t - mu) ** 2, -1, keepdims=True)
        return (t - mu) / jnp.sqrt(var + 1e-5) * g + b

    inner = heads * dim_head
    b_, n2, _ = latents.shape
    xn = ln(x, params["ln1_g"][0], params["ln1_b"][0])
    latn = ln(latents, params["ln2_g"][0], params["ln2_b"][0])
    q = latn @ params["wq_t"]
    kv = jnp.concatenate([xn, latn], axis=1) @ params["wkv_t"]
    k, v = kv[..., :inner], kv[..., inner:]

    def rs(t):
        bb, l, _ = t.shape
        return t.reshape(bb, l, heads, dim_head).transpose(0, 2, 1, 3)

    q, k, v = rs(q), rs(k), rs(v)
    scale = dim_head ** (-0.25)
    w = (q * scale) @ jnp.swapaxes(k * scale, -1, -2)
    am = jnp.transpose(mask, (0, 2, 1))
    am = jnp.concatenate([am, jnp.ones((b_, 1, n2), am.dtype)], axis=2)
    am = (am - 1.0) * 100.0
    w = w + am[:, None]
    w = jax.nn.softmax(w.astype(jnp.float32), axis=-1)
    out = w @ v
    out = out.transpose(0, 2, 1, 3).reshape(b_, n2, inner)
    return out @ params["wo_t"]


def reference_bf16(x, latents, mask, params, heads, dim_head):
    """Mirrors the kernel's fused-QKV / bf16-MXU / f32-accumulate cast points."""
    f32, bf16 = jnp.float32, jnp.bfloat16
    eps = 1e-5
    inner = heads * dim_head
    b_, n1, D = x.shape
    n2 = latents.shape[1]

    def ln(t, g, b):
        mu = jnp.mean(t, -1, keepdims=True)
        var = jnp.mean((t - mu) ** 2, -1, keepdims=True)
        return (t - mu) * jax.lax.rsqrt(var + eps) * g + b

    xn = ln(x.astype(f32), params["ln1_g"][0], params["ln1_b"][0])
    latn = ln(latents.astype(f32), params["ln2_g"][0], params["ln2_b"][0])
    kv_in = jnp.concatenate([xn.astype(bf16), latn.astype(bf16)], axis=1)

    wqkv = jnp.concatenate([params["wq_t"] * (dim_head ** -0.5),
                            params["wkv_t"]], axis=1).astype(bf16)
    wo = params["wo_t"].astype(bf16)

    qkv = jnp.einsum("bnd,dk->bnk", kv_in, wqkv, preferred_element_type=f32)
    q = qkv[:, n1:, :inner]
    k = qkv[:, :, inner:2 * inner]
    v = qkv[:, :, 2 * inner:]

    def rs(t):
        bb, l, _ = t.shape
        return t.reshape(bb, l, heads, dim_head).transpose(0, 2, 1, 3).astype(bf16)

    qh, kh, vh = rs(q), rs(k), rs(v)
    s = jnp.einsum("bhqc,bhkc->bhqk", qh, kh, preferred_element_type=f32)
    am = jnp.transpose(mask.astype(f32), (0, 2, 1))
    am = jnp.concatenate([am, jnp.ones((b_, 1, n2), f32)], axis=-1)
    am = (am - 1.0) * 100.0
    s = s + am[:, None]
    p = jax.nn.softmax(s, axis=-1)
    o = jnp.einsum("bhqk,bhkc->bhqc", p.astype(bf16), vh,
                   preferred_element_type=f32)
    o = o.transpose(0, 2, 1, 3).reshape(b_, n2, inner).astype(bf16)
    return jnp.einsum("bqi,id->bqd", o, wo,
                      preferred_element_type=f32).astype(x.dtype)


if __name__ == "__main__":
    # module hyper-params (small but shape-consistent with PerceiverAttention)
    dim = 64          # D
    dim_head = 32
    heads = 4
    inner = dim_head * heads

    b, n1, n2 = 2, 16, 8

    key = jax.random.PRNGKey(0)
    kx, kl, km, k1, k2, k3 = jax.random.split(key, 6)

    x = jax.random.normal(kx, (b, n1, dim), dtype=jnp.float32)
    latents = jax.random.normal(kl, (b, n2, dim), dtype=jnp.float32)
    attention_mask = jax.random.bernoulli(km, 0.75, (b, n1, 1)).astype(jnp.float32)

    # LayerNorm params like PyTorch default; Linear weights pre-transposed
    # (in_dim, out_dim), small normal.
    params = {
        "ln1_g": jnp.ones((1, dim), jnp.float32),
        "ln1_b": jnp.zeros((1, dim), jnp.float32),
        "ln2_g": jnp.ones((1, dim), jnp.float32),
        "ln2_b": jnp.zeros((1, dim), jnp.float32),
        "wq_t": 0.05 * jax.random.normal(k1, (dim, inner), dtype=jnp.float32),
        "wkv_t": 0.05 * jax.random.normal(k2, (dim, 2 * inner), dtype=jnp.float32),
        "wo_t": 0.05 * jax.random.normal(k3, (inner, dim), dtype=jnp.float32),
    }

    out = perceiver_attention(x, latents, attention_mask, params,
                              heads=heads, dim_head=dim_head)
    out = jax.block_until_ready(out)

    # Tight check vs a reference mirroring the kernel's bf16 MXU cast points.
    ref_b = reference_bf16(x, latents, attention_mask, params, heads, dim_head)
    np.testing.assert_allclose(np.asarray(out), np.asarray(ref_b),
                               rtol=1e-2, atol=2e-3)

    # Loose sanity check vs the pure-f32 PyTorch-faithful reference.
    ref_f = reference_f32(x, latents, attention_mask, params, heads, dim_head)
    np.testing.assert_allclose(np.asarray(out), np.asarray(ref_f),
                               rtol=5e-2, atol=5e-3)

    print("KERNEL_OK")
</pallas_src>

<mosaic_0001>
module attributes {stable_mosaic.version = 11 : i64} {
  func.func @_perceiver_attn_kernel(%arg0: i32, %arg1: memref<2x16x64xf32, #tpu.memory_space<vmem>>, %arg2: memref<2x8x64xf32, #tpu.memory_space<vmem>>, %arg3: memref<2x1x24xf32, #tpu.memory_space<vmem>>, %arg4: memref<1x64xf32, #tpu.memory_space<vmem>>, %arg5: memref<1x64xf32, #tpu.memory_space<vmem>>, %arg6: memref<1x64xf32, #tpu.memory_space<vmem>>, %arg7: memref<1x64xf32, #tpu.memory_space<vmem>>, %arg8: memref<64x384xbf16, #tpu.memory_space<vmem>>, %arg9: memref<128x64xbf16, #tpu.memory_space<vmem>>, %arg10: memref<16x64xf32, #tpu.memory_space<vmem>>) attributes {dimension_semantics = [#tpu.dimension_semantics<parallel>], iteration_bounds = array<i64: 1>, scalar_prefetch = 0 : i64, scratch_operands = 0 : i64, tpu.core_type = #tpu.core_type<tc>, window_params = [{transform_indices = @transform_0, window_bounds = array<i64: 2, 16, 64>}, {transform_indices = @transform_1, window_bounds = array<i64: 2, 8, 64>}, {transform_indices = @transform_2, window_bounds = array<i64: 2, 1, 24>}, {pipeline_mode = #tpu.pipeline_mode<synchronous>, transform_indices = @transform_3, window_bounds = array<i64: 1, 64>}, {pipeline_mode = #tpu.pipeline_mode<synchronous>, transform_indices = @transform_4, window_bounds = array<i64: 1, 64>}, {pipeline_mode = #tpu.pipeline_mode<synchronous>, transform_indices = @transform_5, window_bounds = array<i64: 1, 64>}, {pipeline_mode = #tpu.pipeline_mode<synchronous>, transform_indices = @transform_6, window_bounds = array<i64: 1, 64>}, {pipeline_mode = #tpu.pipeline_mode<synchronous>, transform_indices = @transform_7, window_bounds = array<i64: 64, 384>}, {pipeline_mode = #tpu.pipeline_mode<synchronous>, transform_indices = @transform_8, window_bounds = array<i64: 128, 64>}, {transform_indices = @transform_9, window_bounds = array<i64: 16, 64>}]} {
    %c0 = arith.constant 0 : index
    %c0_0 = arith.constant 0 : index
    %c0_1 = arith.constant 0 : index
    %0 = vector.load %arg1[%c0, %c0_0, %c0_1] : memref<2x16x64xf32, #tpu.memory_space<vmem>>, vector<2x16x64xf32>
    %c0_2 = arith.constant 0 : index
    %c0_3 = arith.constant 0 : index
    %c0_4 = arith.constant 0 : index
    %1 = vector.load %arg2[%c0_2, %c0_3, %c0_4] : memref<2x8x64xf32, #tpu.memory_space<vmem>>, vector<2x8x64xf32>
    %c0_5 = arith.constant 0 : index
    %c0_6 = arith.constant 0 : index
    %c0_7 = arith.constant 0 : index
    %2 = vector.load %arg3[%c0_5, %c0_6, %c0_7] : memref<2x1x24xf32, #tpu.memory_space<vmem>>, vector<2x1x24xf32>
    %c0_8 = arith.constant 0 : index
    %c0_9 = arith.constant 0 : index
    %3 = vector.load %arg4[%c0_8, %c0_9] : memref<1x64xf32, #tpu.memory_space<vmem>>, vector<1x64xf32>
    %c0_10 = arith.constant 0 : index
    %c0_11 = arith.constant 0 : index
    %4 = vector.load %arg5[%c0_10, %c0_11] : memref<1x64xf32, #tpu.memory_space<vmem>>, vector<1x64xf32>
    %cst = arith.constant dense<0.000000e+00> : vector<2x16xf32>
    %5 = vector.multi_reduction <add>, %0, %cst [2] : vector<2x16x64xf32> to vector<2x16xf32>
    %6 = vector.shape_cast %5 : vector<2x16xf32> to vector<2x16x1xf32>
    %cst_12 = arith.constant 6.400000e+01 : f32
    %7 = vector.broadcast %cst_12 : f32 to vector<2x16x1xf32>
    %8 = arith.divf %6, %7 : vector<2x16x1xf32>
    %9 = vector.broadcast %8 : vector<2x16x1xf32> to vector<2x16x64xf32>
    %10 = arith.subf %0, %9 : vector<2x16x64xf32>
    %11 = vector.broadcast %8 : vector<2x16x1xf32> to vector<2x16x64xf32>
    %12 = arith.subf %0, %11 : vector<2x16x64xf32>
    %13 = arith.mulf %10, %12 : vector<2x16x64xf32>
    %cst_13 = arith.constant dense<0.000000e+00> : vector<2x16xf32>
    %14 = vector.multi_reduction <add>, %13, %cst_13 [2] : vector<2x16x64xf32> to vector<2x16xf32>
    %15 = vector.shape_cast %14 : vector<2x16xf32> to vector<2x16x1xf32>
    %cst_14 = arith.constant 6.400000e+01 : f32
    %16 = vector.broadcast %cst_14 : f32 to vector<2x16x1xf32>
    %17 = arith.divf %15, %16 : vector<2x16x1xf32>
    %18 = vector.broadcast %8 : vector<2x16x1xf32> to vector<2x16x64xf32>
    %19 = arith.subf %0, %18 : vector<2x16x64xf32>
    %cst_15 = arith.constant 9.99999974E-6 : f32
    %20 = vector.broadcast %cst_15 : f32 to vector<2x16x1xf32>
    %21 = arith.addf %17, %20 : vector<2x16x1xf32>
    %22 = math.rsqrt %21 : vector<2x16x1xf32>
    %23 = vector.broadcast %22 : vector<2x16x1xf32> to vector<2x16x64xf32>
    %24 = arith.mulf %19, %23 : vector<2x16x64xf32>
    %25 = vector.shape_cast %3 : vector<1x64xf32> to vector<1x1x64xf32>
    %26 = vector.broadcast %25 : vector<1x1x64xf32> to vector<2x16x64xf32>
    %27 = arith.mulf %24, %26 : vector<2x16x64xf32>
    %28 = vector.shape_cast %4 : vector<1x64xf32> to vector<1x1x64xf32>
    %29 = vector.broadcast %28 : vector<1x1x64xf32> to vector<2x16x64xf32>
    %30 = arith.addf %27, %29 : vector<2x16x64xf32>
    %c0_16 = arith.constant 0 : index
    %c0_17 = arith.constant 0 : index
    %31 = vector.load %arg6[%c0_16, %c0_17] : memref<1x64xf32, #tpu.memory_space<vmem>>, vector<1x64xf32>
    %c0_18 = arith.constant 0 : index
    %c0_19 = arith.constant 0 : index
    %32 = vector.load %arg7[%c0_18, %c0_19] : memref<1x64xf32, #tpu.memory_space<vmem>>, vector<1x64xf32>
    %cst_20 = arith.constant dense<0.000000e+00> : vector<2x8xf32>
    %33 = vector.multi_reduction <add>, %1, %cst_20 [2] : vector<2x8x64xf32> to vector<2x8xf32>
    %34 = vector.shape_cast %33 : vector<2x8xf32> to vector<2x8x1xf32>
    %cst_21 = arith.constant 6.400000e+01 : f32
    %35 = vector.broadcast %cst_21 : f32 to vector<2x8x1xf32>
    %36 = arith.divf %34, %35 : vector<2x8x1xf32>
    %37 = vector.broadcast %36 : vector<2x8x1xf32> to vector<2x8x64xf32>
    %38 = arith.subf %1, %37 : vector<2x8x64xf32>
    %39 = vector.broadcast %36 : vector<2x8x1xf32> to vector<2x8x64xf32>
    %40 = arith.subf %1, %39 : vector<2x8x64xf32>
    %41 = arith.mulf %38, %40 : vector<2x8x64xf32>
    %cst_22 = arith.constant dense<0.000000e+00> : vector<2x8xf32>
    %42 = vector.multi_reduction <add>, %41, %cst_22 [2] : vector<2x8x64xf32> to vector<2x8xf32>
    %43 = vector.shape_cast %42 : vector<2x8xf32> to vector<2x8x1xf32>
    %cst_23 = arith.constant 6.400000e+01 : f32
    %44 = vector.broadcast %cst_23 : f32 to vector<2x8x1xf32>
    %45 = arith.divf %43, %44 : vector<2x8x1xf32>
    %46 = vector.broadcast %36 : vector<2x8x1xf32> to vector<2x8x64xf32>
    %47 = arith.subf %1, %46 : vector<2x8x64xf32>
    %cst_24 = arith.constant 9.99999974E-6 : f32
    %48 = vector.broadcast %cst_24 : f32 to vector<2x8x1xf32>
    %49 = arith.addf %45, %48 : vector<2x8x1xf32>
    %50 = math.rsqrt %49 : vector<2x8x1xf32>
    %51 = vector.broadcast %50 : vector<2x8x1xf32> to vector<2x8x64xf32>
    %52 = arith.mulf %47, %51 : vector<2x8x64xf32>
    %53 = vector.shape_cast %31 : vector<1x64xf32> to vector<1x1x64xf32>
    %54 = vector.broadcast %53 : vector<1x1x64xf32> to vector<2x8x64xf32>
    %55 = arith.mulf %52, %54 : vector<2x8x64xf32>
    %56 = vector.shape_cast %32 : vector<1x64xf32> to vector<1x1x64xf32>
    %57 = vector.broadcast %56 : vector<1x1x64xf32> to vector<2x8x64xf32>
    %58 = arith.addf %55, %57 : vector<2x8x64xf32>
    %59 = arith.truncf %30 : vector<2x16x64xf32> to vector<2x16x64xbf16>
    %60 = arith.truncf %58 : vector<2x8x64xf32> to vector<2x8x64xbf16>
    %61 = tpu.concatenate %59, %60 in 1 : vector<2x16x64xbf16>, vector<2x8x64xbf16> -> vector<2x24x64xbf16>
    %62 = vector.shape_cast %61 : vector<2x24x64xbf16> to vector<48x64xbf16>
    %c0_25 = arith.constant 0 : index
    %c0_26 = arith.constant 0 : index
    %63 = vector.load %arg8[%c0_25, %c0_26] : memref<64x384xbf16, #tpu.memory_space<vmem>>, vector<64x384xbf16>
    %cst_27 = arith.constant dense<0.000000e+00> : vector<48x384xf32>
    %64 = tpu.matmul %62, %63, %cst_27 {dimension_numbers = #tpu.dot_dimension_numbers<[1], [0], [0], [1], [0, 0, 1, 1], [], []>} : vector<48x64xbf16>, vector<64x384xbf16>, vector<48x384xf32> -> vector<48x384xf32>
    %65 = vector.shape_cast %64 : vector<48x384xf32> to vector<2x24x384xf32>
    %66 = vector.extract_strided_slice %65 {offsets = [0, 16, 0], sizes = [2, 8, 128], strides = [1, 1, 1]} : vector<2x24x384xf32> to vector<2x8x128xf32>
    %67 = vector.extract_strided_slice %65 {offsets = [0, 0, 128], sizes = [2, 24, 128], strides = [1, 1, 1]} : vector<2x24x384xf32> to vector<2x24x128xf32>
    %68 = vector.extract_strided_slice %65 {offsets = [0, 0, 256], sizes = [2, 24, 128], strides = [1, 1, 1]} : vector<2x24x384xf32> to vector<2x24x128xf32>
    %69 = vector.shape_cast %66 : vector<2x8x128xf32> to vector<2x8x4x32xf32>
    %70 = tpu.transpose %69, [0, 2, 1, 3] : vector<2x8x4x32xf32> -> vector<2x4x8x32xf32>
    %71 = vector.shape_cast %70 : vector<2x4x8x32xf32> to vector<8x8x32xf32>
    %72 = arith.truncf %71 : vector<8x8x32xf32> to vector<8x8x32xbf16>
    %73 = vector.shape_cast %67 : vector<2x24x128xf32> to vector<2x24x4x32xf32>
    %74 = tpu.transpose %73, [0, 2, 1, 3] : vector<2x24x4x32xf32> -> vector<2x4x24x32xf32>
    %75 = vector.shape_cast %74 : vector<2x4x24x32xf32> to vector<8x24x32xf32>
    %76 = arith.truncf %75 : vector<8x24x32xf32> to vector<8x24x32xbf16>
    %77 = vector.shape_cast %68 : vector<2x24x128xf32> to vector<2x24x4x32xf32>
    %78 = tpu.transpose %77, [0, 2, 1, 3] : vector<2x24x4x32xf32> -> vector<2x4x24x32xf32>
    %79 = vector.shape_cast %78 : vector<2x4x24x32xf32> to vector<8x24x32xf32>
    %80 = arith.truncf %79 : vector<8x24x32xf32> to vector<8x24x32xbf16>
    "tpu.trace_start"() <{level = 10 : i32, message = "gqc,gkc->gqk"}> : () -> ()
    %cst_28 = arith.constant dense<0.000000e+00> : vector<8x8x24xf32>
    %81 = tpu.matmul %72, %76, %cst_28 {dimension_numbers = #tpu.dot_dimension_numbers<[2], [2], [1], [1], [0, 0, 0, 1, 1, 1], [0], [0]>} : vector<8x8x32xbf16>, vector<8x24x32xbf16>, vector<8x8x24xf32> -> vector<8x8x24xf32>
    "tpu.trace_stop"() : () -> ()
    %82 = vector.shape_cast %81 : vector<8x8x24xf32> to vector<2x4x8x24xf32>
    %83 = vector.shape_cast %2 : vector<2x1x24xf32> to vector<2x1x1x24xf32>
    %84 = vector.broadcast %83 : vector<2x1x1x24xf32> to vector<2x4x8x24xf32>
    %85 = arith.addf %82, %84 : vector<2x4x8x24xf32>
    %cst_29 = arith.constant dense<0xFF800000> : vector<2x4x8xf32>
    %86 = vector.multi_reduction <maximumf>, %85, %cst_29 [3] : vector<2x4x8x24xf32> to vector<2x4x8xf32>
    %87 = vector.shape_cast %86 : vector<2x4x8xf32> to vector<2x4x8x1xf32>
    %88 = vector.broadcast %87 : vector<2x4x8x1xf32> to vector<2x4x8x24xf32>
    %89 = arith.subf %85, %88 : vector<2x4x8x24xf32>
    %90 = math.exp %89 : vector<2x4x8x24xf32>
    %cst_30 = arith.constant dense<0.000000e+00> : vector<2x4x8xf32>
    %91 = vector.multi_reduction <add>, %90, %cst_30 [3] : vector<2x4x8x24xf32> to vector<2x4x8xf32>
    %92 = vector.shape_cast %91 : vector<2x4x8xf32> to vector<2x4x8x1xf32>
    %93 = tpu.reciprocal %92 {approx = true} : vector<2x4x8x1xf32> -> vector<2x4x8x1xf32>
    %94 = vector.broadcast %93 : vector<2x4x8x1xf32> to vector<2x4x8x24xf32>
    %95 = arith.mulf %90, %94 : vector<2x4x8x24xf32>
    %96 = vector.shape_cast %95 : vector<2x4x8x24xf32> to vector<8x8x24xf32>
    %97 = arith.truncf %96 : vector<8x8x24xf32> to vector<8x8x24xbf16>
    "tpu.trace_start"() <{level = 10 : i32, message = "gqk,gkc->gqc"}> : () -> ()
    %cst_31 = arith.constant dense<0.000000e+00> : vector<8x8x32xf32>
    %98 = tpu.matmul %97, %80, %cst_31 {dimension_numbers = #tpu.dot_dimension_numbers<[2], [1], [1], [2], [0, 0, 0, 1, 1, 2], [0], [0]>} : vector<8x8x24xbf16>, vector<8x24x32xbf16>, vector<8x8x32xf32> -> vector<8x8x32xf32>
    "tpu.trace_stop"() : () -> ()
    %99 = vector.shape_cast %98 : vector<8x8x32xf32> to vector<2x4x8x32xf32>
    %100 = tpu.transpose %99, [0, 2, 1, 3] : vector<2x4x8x32xf32> -> vector<2x8x4x32xf32>
    %101 = vector.shape_cast %100 : vector<2x8x4x32xf32> to vector<16x128xf32>
    %102 = arith.truncf %101 : vector<16x128xf32> to vector<16x128xbf16>
    %c0_32 = arith.constant 0 : index
    %c0_33 = arith.constant 0 : index
    %103 = vector.load %arg9[%c0_32, %c0_33] : memref<128x64xbf16, #tpu.memory_space<vmem>>, vector<128x64xbf16>
    %cst_34 = arith.constant dense<0.000000e+00> : vector<16x64xf32>
    %104 = tpu.matmul %102, %103, %cst_34 {dimension_numbers = #tpu.dot_dimension_numbers<[1], [0], [0], [1], [0, 0, 1, 1], [], []>} : vector<16x128xbf16>, vector<128x64xbf16>, vector<16x64xf32> -> vector<16x64xf32>
    %c0_35 = arith.constant 0 : index
    %c0_36 = arith.constant 0 : index
    %105 = vector.load %arg10[%c0_35, %c0_36] : memref<16x64xf32, #tpu.memory_space<vmem>>, vector<16x64xf32>
    tpu.vector_store %arg10[%c0_35, %c0_36], %104 {strides = array<i32>} : memref<16x64xf32, #tpu.memory_space<vmem>>, vector<16x64xf32>,
    return
  }
  func.func @transform_0(%arg0: i32) -> (i32, i32, i32) {
    %c0_i32 = arith.constant 0 : i32
    %c0_i32_0 = arith.constant 0 : i32
    %c0_i32_1 = arith.constant 0 : i32
    return %arg0, %c0_i32, %c0_i32_0 : i32, i32, i32
  }
  func.func @transform_1(%arg0: i32) -> (i32, i32, i32) {
    %c0_i32 = arith.constant 0 : i32
    %c0_i32_0 = arith.constant 0 : i32
    %c0_i32_1 = arith.constant 0 : i32
    return %arg0, %c0_i32, %c0_i32_0 : i32, i32, i32
  }
  func.func @transform_2(%arg0: i32) -> (i32, i32, i32) {
    %c0_i32 = arith.constant 0 : i32
    %c0_i32_0 = arith.constant 0 : i32
    %c0_i32_1 = arith.constant 0 : i32
    return %arg0, %c0_i32, %c0_i32_0 : i32, i32, i32
  }
  func.func @transform_3(%arg0: i32) -> (i32, i32) {
    %c0_i32 = arith.constant 0 : i32
    %c0_i32_0 = arith.constant 0 : i32
    %c0_i32_1 = arith.constant 0 : i32
    return %c0_i32, %c0_i32_0 : i32, i32
  }
  func.func @transform_4(%arg0: i32) -> (i32, i32) {
    %c0_i32 = arith.constant 0 : i32
    %c0_i32_0 = arith.constant 0 : i32
    %c0_i32_1 = arith.constant 0 : i32
    return %c0_i32, %c0_i32_0 : i32, i32
  }
  func.func @transform_5(%arg0: i32) -> (i32, i32) {
    %c0_i32 = arith.constant 0 : i32
    %c0_i32_0 = arith.constant 0 : i32
    %c0_i32_1 = arith.constant 0 : i32
    return %c0_i32, %c0_i32_0 : i32, i32
  }
  func.func @transform_6(%arg0: i32) -> (i32, i32) {
    %c0_i32 = arith.constant 0 : i32
    %c0_i32_0 = arith.constant 0 : i32
    %c0_i32_1 = arith.constant 0 : i32
    return %c0_i32, %c0_i32_0 : i32, i32
  }
  func.func @transform_7(%arg0: i32) -> (i32, i32) {
    %c0_i32 = arith.constant 0 : i32
    %c0_i32_0 = arith.constant 0 : i32
    %c0_i32_1 = arith.constant 0 : i32
    return %c0_i32, %c0_i32_0 : i32, i32
  }
  func.func @transform_8(%arg0: i32) -> (i32, i32) {
    %c0_i32 = arith.constant 0 : i32
    %c0_i32_0 = arith.constant 0 : i32
    %c0_i32_1 = arith.constant 0 : i32
    return %c0_i32, %c0_i32_0 : i32, i32
  }
  func.func @transform_9(%arg0: i32) -> (i32, i32) {
    %c0_i32 = arith.constant 0 : i32
    %c0_i32_0 = arith.constant 0 : i32
    return %arg0, %c0_i32 : i32, i32
  }
}

</mosaic_0001>

<llo_original>
// kernel: perceiver_attention.1
$region0: #{perceiver_attention.1}
  #allocation0 [shape = 'u32[]', space=smem, size = 0x4, offset = 0x4, fixed_abs, tag = 'smem constant byte address 0x4 - core index']
  #allocation1 [shape = 'u32[72,128]{1,0:T(1,128)}', space=vmem, size = 0x9000, scoped, tag = 'internal scratch']
  %s0 = inlined_call_operand.vmem [shape: f32[2,16,64], index: 0, kind: input, shape index: {}]
  %s1 = inlined_call_operand.vmem [shape: f32[2,8,64], index: 1, kind: input, shape index: {}]
  %s2 = inlined_call_operand.vmem [shape: f32[2,1,24], index: 2, kind: input, shape index: {}]
  %s3 = inlined_call_operand.vmem [shape: f32[1,64], index: 3, kind: input, shape index: {}]
  %s4 = inlined_call_operand.vmem [shape: f32[1,64], index: 4, kind: input, shape index: {}]
  %s5 = inlined_call_operand.vmem [shape: f32[1,64], index: 5, kind: input, shape index: {}]
  %s6 = inlined_call_operand.vmem [shape: f32[1,64], index: 6, kind: input, shape index: {}]
  %s7 = inlined_call_operand.vmem [shape: bf16[64,384], index: 7, kind: input, shape index: {}]
  %s8 = inlined_call_operand.vmem [shape: bf16[128,64], index: 8, kind: input, shape index: {}]
  %s9 = inlined_call_operand.hbm [shape: f32[16,64], index: 9, kind: output, shape index: {}]
  %s10 = sld [smem:[#allocation0]]
  $region46: #{perceiver_attention.1} parent=0
    _
  %s12 = ssub.s32 1, %s10
  %s13 = scalar_select 0, %s12, %s10
  $region1: #{perceiver_attention.1} parent=0
    #allocation2 [shape = 'u8[8192]{0}', space=vmem, size = 0x2000, scoped, tag = 'output window, operand 0, single buffered']
    #allocation3 [shape = 's32[1]{0}', space=sflag, size = 0x4, scoped, tag = 'scoped memory for perceiver_attention.1']
    %14 = vsyncpa [#allocation3], 0
    // Predicated region
    $region2: #{perceiver_attention.1} parent=1 // pred_check
      _
    $region3: #{perceiver_attention.1} parent=1 // pred_check_branch
      %16 = sbr.rel (0) target = $region5
    $region4: #{perceiver_attention.1} parent=1 // pred_region
      _
    $region5: #{perceiver_attention.1} parent=1 // pred_fallthru
      _
    // Predicated region
    $region6: #{perceiver_attention.1} parent=1 // pred_check
      _
    $region7: #{perceiver_attention.1} parent=1 // pred_check_branch
      %18 = sbr.rel (0) target = $region9
    $region8: #{perceiver_attention.1} parent=1 // pred_region
      _
    $region9: #{perceiver_attention.1} parent=1 // pred_fallthru
      _
    // Predicated region
    $region10: #{perceiver_attention.1} parent=1 // pred_check
      _
    $region11: #{perceiver_attention.1} parent=1 // pred_check_branch
      %20 = sbr.rel (0) target = $region13
    $region12: #{perceiver_attention.1} parent=1 // pred_region
      _
    $region13: #{perceiver_attention.1} parent=1 // pred_fallthru
      _
    // Predicated region
    $region14: #{perceiver_attention.1} parent=1 // pred_check
      _
    $region15: #{perceiver_attention.1} parent=1 // pred_check_branch
      %22 = sbr.rel (0) target = $region17
    $region16: #{perceiver_attention.1} parent=1 // pred_region
      _
    $region17: #{perceiver_attention.1} parent=1 // pred_fallthru
      _
    // Predicated region
    $region18: #{perceiver_attention.1} parent=1 // pred_check
      _
    $region19: #{perceiver_attention.1} parent=1 // pred_check_branch
      %24 = sbr.rel (0) target = $region21
    $region20: #{perceiver_attention.1} parent=1 // pred_region
      _
    $region21: #{perceiver_attention.1} parent=1 // pred_fallthru
      _
    // Predicated region
    $region22: #{perceiver_attention.1} parent=1 // pred_check
      _
    $region23: #{perceiver_attention.1} parent=1 // pred_check_branch
      %26 = sbr.rel (0) target = $region25
    $region24: #{perceiver_attention.1} parent=1 // pred_region
      _
    $region25: #{perceiver_attention.1} parent=1 // pred_fallthru
      _
    // Predicated region
    $region26: #{perceiver_attention.1} parent=1 // pred_check
      _
    $region27: #{perceiver_attention.1} parent=1 // pred_check_branch
      %28 = sbr.rel (0) target = $region29
    $region28: #{perceiver_attention.1} parent=1 // pred_region
      _
    $region29: #{perceiver_attention.1} parent=1 // pred_fallthru
      _
    // Predicated region
    $region30: #{perceiver_attention.1} parent=1 // pred_check
      _
    $region31: #{perceiver_attention.1} parent=1 // pred_check_branch
      %30 = sbr.rel (0) target = $region33
    $region32: #{perceiver_attention.1} parent=1 // pred_region
      _
    $region33: #{perceiver_attention.1} parent=1 // pred_fallthru
      _
    // Predicated region
    $region34: #{perceiver_attention.1} parent=1 // pred_check
      _
    $region35: #{perceiver_attention.1} parent=1 // pred_check_branch
      %32 = sbr.rel (0) target = $region37
    $region36: #{perceiver_attention.1} parent=1 // pred_region
      _
    $region37: #{perceiver_attention.1} parent=1 // pred_fallthru
      _
    %v34 = vld [vmem:[%s0] sm:$0xff]
    %v35 = vld [vmem:[%s0 + $0x8] sm:$0xff]
    %v36 = vld [vmem:[%s0 + $0x10] sm:$0xff]
    %v37 = vld [vmem:[%s0 + $0x18] sm:$0xff]
    %v38 = vld [vmem:[%s1] sm:$0xff]
    %v39 = vld [vmem:[%s1 + $0x8] sm:$0xff]
    %v40 = vld [vmem:[%s2] sm:$0x1]
    %v41 = vld [vmem:[%s2 + $0x1] sm:$0x1]
    %v42 = vld [vmem:[%s3] sm:$0x1]
    %v43 = vld [vmem:[%s4] sm:$0x1]
    %vm44 = vcmask 523264
    %v45 = vsel %vm44, %v34, 0.0
    %46 = vadd.xlane.f32.xlu0 %v45
    %v47 = vpop.xlane.xlu0 %46
    %v48 = vsel %vm44, %v35, 0.0
    %49 = vadd.xlane.f32.xlu0 %v48
    %v50 = vpop.xlane.xlu0 %49
    %v51 = vsel %vm44, %v36, 0.0
    %52 = vadd.xlane.f32.xlu0 %v51
    %v53 = vpop.xlane.xlu0 %52
    %v54 = vsel %vm44, %v37, 0.0
    %55 = vadd.xlane.f32.xlu0 %v54
    %v56 = vpop.xlane.xlu0 %55
    %v57 = vrcp.pop 64.0
    %v58 = vmul.f32 64.0, %v57
    %v59 = vsub.f32 1.0, %v58
    %v60 = vmul.f32 %v57, %v59
    %v61 = vadd.f32 %v57, %v60
    %vm62 = vweird.f32 %v57
    %v63 = vsel %vm62, %v57, %v61
    %v64 = vmul.f32 %v47, %v63
    %v65 = vmul.f32 %v50, %v63
    %v66 = vmul.f32 %v53, %v63
    %v67 = vmul.f32 %v56, %v63
    %v68 = vsub.f32 %v34, %v64
    %v69 = vsub.f32 %v35, %v65
    %v70 = vsub.f32 %v36, %v66
    %v71 = vsub.f32 %v37, %v67
    %v72 = vmul.f32 %v68, %v68
    %v73 = vmul.f32 %v69, %v69
    %v74 = vmul.f32 %v70, %v70
    %v75 = vmul.f32 %v71, %v71
    %v76 = vsel %vm44, %v72, 0.0
    %77 = vadd.xlane.f32.xlu0 %v76
    %v78 = vpop.xlane.xlu0 %77
    %v79 = vsel %vm44, %v73, 0.0
    %80 = vadd.xlane.f32.xlu0 %v79
    %v81 = vpop.xlane.xlu0 %80
    %v82 = vsel %vm44, %v74, 0.0
    %83 = vadd.xlane.f32.xlu0 %v82
    %v84 = vpop.xlane.xlu0 %83
    %v85 = vsel %vm44, %v75, 0.0
    %86 = vadd.xlane.f32.xlu0 %v85
    %v87 = vpop.xlane.xlu0 %86
    %v88 = vmul.f32 %v78, %v63
    %v89 = vmul.f32 %v81, %v63
    %v90 = vmul.f32 %v84, %v63
    %v91 = vmul.f32 %v87, %v63
    %v92 = vadd.f32 %v88, 1e-05
    %v93 = vadd.f32 %v89, 1e-05
    %v94 = vadd.f32 %v90, 1e-05
    %v95 = vadd.f32 %v91, 1e-05
    %v96 = vrsqrt.pop %v92
    %v97 = vmul.f32 %v96, %v92
    %v98 = vmul.f32 %v97, %v96
    %v99 = vmul.f32 0.5, %v98
    %v100 = vsub.f32 1.5, %v99
    %v101 = vmul.f32 %v96, %v100
    %vm102 = vweird.f32 %v92
    %vm103 = vweird.f32 %v96
    %vm104 = vmor %vm102, %vm103
    %v105 = vsel %vm104, %v96, %v101
    %v106 = vrsqrt.pop %v93
    %v107 = vmul.f32 %v106, %v93
    %v108 = vmul.f32 %v107, %v106
    %v109 = vmul.f32 0.5, %v108
    %v110 = vsub.f32 1.5, %v109
    %v111 = vmul.f32 %v106, %v110
    %vm112 = vweird.f32 %v93
    %vm113 = vweird.f32 %v106
    %vm114 = vmor %vm112, %vm113
    %v115 = vsel %vm114, %v106, %v111
    %v116 = vrsqrt.pop %v94
    %v117 = vmul.f32 %v116, %v94
    %v118 = vmul.f32 %v117, %v116
    %v119 = vmul.f32 0.5, %v118
    %v120 = vsub.f32 1.5, %v119
    %v121 = vmul.f32 %v116, %v120
    %vm122 = vweird.f32 %v94
    %vm123 = vweird.f32 %v116
    %vm124 = vmor %vm122, %vm123
    %v125 = vsel %vm124, %v116, %v121
    %v126 = vrsqrt.pop %v95
    %v127 = vmul.f32 %v126, %v95
    %v128 = vmul.f32 %v127, %v126
    %v129 = vmul.f32 0.5, %v128
    %v130 = vsub.f32 1.5, %v129
    %v131 = vmul.f32 %v126, %v130
    %vm132 = vweird.f32 %v95
    %vm133 = vweird.f32 %v126
    %vm134 = vmor %vm132, %vm133
    %v135 = vsel %vm134, %v126, %v131
    %v136 = vmul.f32 %v68, %v105
    %v137 = vmul.f32 %v69, %v115
    %v138 = vmul.f32 %v70, %v125
    %v139 = vmul.f32 %v71, %v135
    %v141 = vperm.slane %v42, 0
    %v143 = vmul.f32 %v136, %v141
    %v144 = vmul.f32 %v137, %v141
    %v145 = vmul.f32 %v138, %v141
    %v146 = vmul.f32 %v139, %v141
    %v148 = vperm.slane %v43, 0
    %v150 = vadd.f32 %v143, %v148
    %v151 = vadd.f32 %v144, %v148
    %v152 = vadd.f32 %v145, %v148
    %v153 = vadd.f32 %v146, %v148
    %v154 = vld [vmem:[%s5] sm:$0x1]
    %v155 = vld [vmem:[%s6] sm:$0x1]
    %v156 = vsel %vm44, %v38, 0.0
    %157 = vadd.xlane.f32.xlu0 %v156
    %v158 = vpop.xlane.xlu0 %157
    %v159 = vsel %vm44, %v39, 0.0
    %160 = vadd.xlane.f32.xlu0 %v159
    %v161 = vpop.xlane.xlu0 %160
    %v162 = vmul.f32 %v158, %v63
    %v163 = vmul.f32 %v161, %v63
    %v164 = vsub.f32 %v38, %v162
    %v165 = vsub.f32 %v39, %v163
    %v166 = vmul.f32 %v164, %v164
    %v167 = vmul.f32 %v165, %v165
    %v168 = vsel %vm44, %v166, 0.0
    %169 = vadd.xlane.f32.xlu0 %v168
    %v170 = vpop.xlane.xlu0 %169
    %v171 = vsel %vm44, %v167, 0.0
    %172 = vadd.xlane.f32.xlu0 %v171
    %v173 = vpop.xlane.xlu0 %172
    %v174 = vmul.f32 %v170, %v63
    %v175 = vmul.f32 %v173, %v63
    %v176 = vadd.f32 %v174, 1e-05
    %v177 = vadd.f32 %v175, 1e-05
    %v178 = vrsqrt.pop %v176
    %v179 = vmul.f32 %v178, %v176
    %v180 = vmul.f32 %v179, %v178
    %v181 = vmul.f32 0.5, %v180
    %v182 = vsub.f32 1.5, %v181
    %v183 = vmul.f32 %v178, %v182
    %vm184 = vweird.f32 %v176
    %vm185 = vweird.f32 %v178
    %vm186 = vmor %vm184, %vm185
    %v187 = vsel %vm186, %v178, %v183
    %v188 = vrsqrt.pop %v177
    %v189 = vmul.f32 %v188, %v177
    %v190 = vmul.f32 %v189, %v188
    %v191 = vmul.f32 0.5, %v190
    %v192 = vsub.f32 1.5, %v191
    %v193 = vmul.f32 %v188, %v192
    %vm194 = vweird.f32 %v177
    %vm195 = vweird.f32 %v188
    %vm196 = vmor %vm194, %vm195
    %v197 = vsel %vm196, %v188, %v193
    %v198 = vmul.f32 %v164, %v187
    %v199 = vmul.f32 %v165, %v197
    %v201 = vperm.slane %v154, 0
    %v203 = vmul.f32 %v198, %v201
    %v204 = vmul.f32 %v199, %v201
    %v206 = vperm.slane %v155, 0
    %v208 = vadd.f32 %v203, %v206
    %v209 = vadd.f32 %v204, %v206
    %v210 = vpack.c.bf16 %v150, %v150
    %v211 = vpack.c.bf16 %v151, %v151
    %v212 = vpack.c.bf16 %v152, %v152
    %v213 = vpack.c.bf16 %v153, %v153
    %v214 = vpack.c.bf16 %v208, %v208
    %v215 = vpack.c.bf16 %v209, %v209
    %v220 = vunpack.c.l.b16 %v210
    %v221 = vunpack.c.l.b16 %v211
    %v222 = vunpack.c.l.b16 %v212
    %v223 = vunpack.c.l.b16 %v213
    %v226 = vunpack.c.l.b16 %v214
    %v227 = vunpack.c.l.b16 %v215
    %v228 = vld [vmem:[%s7] sm:$0xff]
    %v229 = vld [vmem:[%s7 + $0x8] sm:$0xf]
    %v230 = vld [vmem:[%s7 + $0xc] sm:$0xff]
    %v231 = vld [vmem:[%s7 + $0x14] sm:$0xf]
    %v232 = vld [vmem:[%s7 + $0x18] sm:$0xff]
    %v233 = vld [vmem:[%s7 + $0x20] sm:$0xf]
    %v234 = vld [vmem:[%s7 + $0x24] sm:$0xff]
    %v235 = vld [vmem:[%s7 + $0x2c] sm:$0xf]
    %v236 = vld [vmem:[%s7 + $0x30] sm:$0xff]
    %v237 = vld [vmem:[%s7 + $0x38] sm:$0xf]
    %v238 = vld [vmem:[%s7 + $0x3c] sm:$0xff]
    %v239 = vld [vmem:[%s7 + $0x44] sm:$0xf]
    %v240 = vld [vmem:[%s7 + $0x48] sm:$0xff]
    %v241 = vld [vmem:[%s7 + $0x50] sm:$0xf]
    %v242 = vld [vmem:[%s7 + $0x54] sm:$0xff]
    %v243 = vld [vmem:[%s7 + $0x5c] sm:$0xf]
    %v244 = vpack.c.b16 %v221, %v220
    %v245 = vpack.c.b16 %v222, %v226
    %v246 = vpack.c.b16 %v227, %v223
    %v263 = vunpack.c.l.b16 %v228
    %v264 = vunpack.c.h.b16 %v228
    %v265 = vunpack.c.l.b16 %v229
    %v266 = vunpack.c.l.b16 %v230
    %v267 = vunpack.c.h.b16 %v230
    %v268 = vunpack.c.l.b16 %v231
    %v269 = vunpack.c.l.b16 %v232
    %v270 = vunpack.c.h.b16 %v232
    %v271 = vunpack.c.l.b16 %v233
    %v272 = vunpack.c.l.b16 %v234
    %v273 = vunpack.c.h.b16 %v234
    %v274 = vunpack.c.l.b16 %v235
    %v275 = vunpack.c.l.b16 %v236
    %v276 = vunpack.c.h.b16 %v236
    %v277 = vunpack.c.l.b16 %v237
    %v278 = vunpack.c.l.b16 %v238
    %v279 = vunpack.c.h.b16 %v238
    %v280 = vunpack.c.l.b16 %v239
    %v281 = vunpack.c.l.b16 %v240
    %v282 = vunpack.c.h.b16 %v240
    %v283 = vunpack.c.l.b16 %v241
    %v284 = vunpack.c.l.b16 %v242
    %v285 = vunpack.c.h.b16 %v242
    %v286 = vunpack.c.l.b16 %v243
    %v287 = vpack.c.b16 %v266, %v263
    %v288 = vpack.c.b16 %v267, %v264
    %v289 = vpack.c.b16 %v268, %v265
    %v290 = vpack.c.b16 %v272, %v269
    %v291 = vpack.c.b16 %v273, %v270
    %v292 = vpack.c.b16 %v274, %v271
    %v293 = vpack.c.b16 %v278, %v275
    %v294 = vpack.c.b16 %v279, %v276
    %v295 = vpack.c.b16 %v280, %v277
    %v296 = vpack.c.b16 %v284, %v281
    %v297 = vpack.c.b16 %v285, %v282
    %v298 = vpack.c.b16 %v286, %v283
    %v312 = vsel %vm44, %v244, 0
    %v315 = vsel %vm44, %v245, 0
    %v318 = vsel %vm44, %v246, 0
    %320 = vmatpush.bf16.msra.mxu0 0
    %321 = vmatpush.bf16.msra.mxu0 0
    %322 = vmatpush.bf16.msra.mxu0 0
    %323 = vmatpush.bf16.msra.mxu0 0
    %324 = vmatpush.bf16.msra.mxu0 %v296
    %325 = vmatpush.bf16.msra.mxu0 %v293
    %326 = vmatpush.bf16.msra.mxu0 %v290
    %327 = vmatpush.bf16.msra.mxu0 %v287
    %328 = vmatmul.bf16.gmra.mxu0 %v312
    %v329 = vpop.f32.mrf.mxu0
    %v330 = vpop.f32.mrf.mxu0
    %331 = vmatmul.bf16.gmra.mxu0 %v315
    %v332 = vpop.f32.mrf.mxu0
    %v333 = vadd.f32 0.0, %v332
    %v334 = vpop.f32.mrf.mxu0
    %335 = vmatmul.bf16.gmra.mxu0 %v318
    %v336 = vpop.f32.mrf.mxu0
    %v337 = vpop.f32.mrf.mxu0
    %v338 = vadd.f32 0.0, %v337
    %339 = vdwg.mxu0
    %340 = vmatpush.bf16.msra.mxu0 0
    %341 = vmatpush.bf16.msra.mxu0 0
    %342 = vmatpush.bf16.msra.mxu0 0
    %343 = vmatpush.bf16.msra.mxu0 0
    %344 = vmatpush.bf16.msra.mxu0 %v297
    %345 = vmatpush.bf16.msra.mxu0 %v294
    %346 = vmatpush.bf16.msra.mxu0 %v291
    %347 = vmatpush.bf16.msra.mxu0 %v288
    %348 = vmatmul.bf16.gmra.mxu0 %v312
    %v349 = vpop.f32.mrf.mxu0
    %v350 = vadd.f32 0.0, %v349
    %v351 = vpop.f32.mrf.mxu0
    %v352 = vadd.f32 0.0, %v351
    %353 = vmatmul.bf16.gmra.mxu0 %v315
    %v354 = vpop.f32.mrf.mxu0
    %v355 = vadd.f32 0.0, %v354
    %v356 = vpop.f32.mrf.mxu0
    %v357 = vadd.f32 0.0, %v356
    %358 = vmatmul.bf16.gmra.mxu0 %v318
    %v359 = vpop.f32.mrf.mxu0
    %v360 = vadd.f32 0.0, %v359
    %v361 = vpop.f32.mrf.mxu0
    %v362 = vadd.f32 0.0, %v361
    %363 = vdwg.mxu0
    %364 = vmatpush.bf16.msra.mxu0 0
    %365 = vmatpush.bf16.msra.mxu0 0
    %366 = vmatpush.bf16.msra.mxu0 0
    %367 = vmatpush.bf16.msra.mxu0 0
    %368 = vmatpush.bf16.msra.mxu0 %v298
    %369 = vmatpush.bf16.msra.mxu0 %v295
    %370 = vmatpush.bf16.msra.mxu0 %v292
    %371 = vmatpush.bf16.msra.mxu0 %v289
    %372 = vmatmul.bf16.gmra.mxu0 %v312
    %v373 = vpop.f32.mrf.mxu0
    %v374 = vadd.f32 0.0, %v373
    %v375 = vpop.f32.mrf.mxu0
    %v376 = vadd.f32 0.0, %v375
    %377 = vmatmul.bf16.gmra.mxu0 %v315
    %v378 = vpop.f32.mrf.mxu0
    %v379 = vadd.f32 0.0, %v378
    %v380 = vpop.f32.mrf.mxu0
    %v381 = vadd.f32 0.0, %v380
    %382 = vmatmul.bf16.gmra.mxu0 %v318
    %v383 = vpop.f32.mrf.mxu0
    %v384 = vadd.f32 0.0, %v383
    %v385 = vpop.f32.mrf.mxu0
    %v386 = vadd.f32 0.0, %v385
    %387 = vdwg.mxu0
    %390 = vrot.lane.b32.xlu0 %v333, 96
    %v391 = vpop.permute.xlu0 %390
    %392 = vrot.lane.b32.xlu0 %v338, 96
    %v393 = vpop.permute.xlu0 %392
    %396 = vrot.lane.b32.xlu0 %v333, 64
    %v397 = vpop.permute.xlu0 %396
    %398 = vrot.lane.b32.xlu0 %v338, 64
    %v399 = vpop.permute.xlu0 %398
    %402 = vrot.lane.b32.xlu0 %v333, 32
    %v403 = vpop.permute.xlu0 %402
    %404 = vrot.lane.b32.xlu0 %v338, 32
    %v405 = vpop.permute.xlu0 %404
    %v408 = vrot.slane %v397, 4
    %vm409 = vcmask 1047556
    %v410 = vsel %vm409, %v408, %v333
    %v411 = vrot.slane %v333, 4
    %v412 = vsel %vm409, %v397, %v411
    %v414 = vunpack.c.l.s4 1983009808
    %v415 = vunpack.c.0.s8 %v414
    %v416 = vperm.slane %v410, %v415
    %v418 = vunpack.c.l.s4 1983009808
    %v419 = vunpack.c.0.s8 %v418
    %v420 = vperm.slane %v412, %v419
    %v421 = vrot.slane %v403, 4
    %v422 = vsel %vm409, %v421, %v391
    %v423 = vrot.slane %v391, 4
    %v424 = vsel %vm409, %v403, %v423
    %v426 = vunpack.c.l.s4 1983009808
    %v427 = vunpack.c.0.s8 %v426
    %v428 = vperm.slane %v422, %v427
    %v430 = vunpack.c.l.s4 1983009808
    %v431 = vunpack.c.0.s8 %v430
    %v432 = vperm.slane %v424, %v431
    %v433 = vrot.slane %v428, 4
    %v434 = vsel %vm409, %v433, %v416
    %v435 = vrot.slane %v416, 4
    %v436 = vsel %vm409, %v428, %v435
    %v438 = vunpack.c.l.s4 1934713408
    %v439 = vunpack.c.0.s8 %v438
    %v440 = vperm.slane %v434, %v439
    %v442 = vunpack.c.l.s4 1934713408
    %v443 = vunpack.c.0.s8 %v442
    %v444 = vperm.slane %v436, %v443
    %v445 = vrot.slane %v432, 4
    %v446 = vsel %vm409, %v445, %v420
    %v447 = vrot.slane %v420, 4
    %v448 = vsel %vm409, %v432, %v447
    %v450 = vunpack.c.l.s4 1934713408
    %v451 = vunpack.c.0.s8 %v450
    %v452 = vperm.slane %v446, %v451
    %v454 = vunpack.c.l.s4 1934713408
    %v455 = vunpack.c.0.s8 %v454
    %v456 = vperm.slane %v448, %v455
    %v457 = vrot.slane %v440, 4
    %v458 = vsel %vm409, 0.0, %v457
    %v459 = vrot.slane %v444, 4
    %v460 = vsel %vm409, 0.0, %v459
    %v461 = vrot.slane %v452, 4
    %v462 = vsel %vm409, 0.0, %v461
    %v463 = vrot.slane %v456, 4
    %v464 = vsel %vm409, 0.0, %v463
    %v465 = vrot.slane %v399, 4
    %v466 = vsel %vm409, %v465, %v338
    %v467 = vrot.slane %v338, 4
    %v468 = vsel %vm409, %v399, %v467
    %v470 = vunpack.c.l.s4 1983009808
    %v471 = vunpack.c.0.s8 %v470
    %v472 = vperm.slane %v466, %v471
    %v474 = vunpack.c.l.s4 1983009808
    %v475 = vunpack.c.0.s8 %v474
    %v476 = vperm.slane %v468, %v475
    %v477 = vrot.slane %v405, 4
    %v478 = vsel %vm409, %v477, %v393
    %v479 = vrot.slane %v393, 4
    %v480 = vsel %vm409, %v405, %v479
    %v482 = vunpack.c.l.s4 1983009808
    %v483 = vunpack.c.0.s8 %v482
    %v484 = vperm.slane %v478, %v483
    %v486 = vunpack.c.l.s4 1983009808
    %v487 = vunpack.c.0.s8 %v486
    %v488 = vperm.slane %v480, %v487
    %v489 = vrot.slane %v484, 4
    %v490 = vsel %vm409, %v489, %v472
    %v491 = vrot.slane %v472, 4
    %v492 = vsel %vm409, %v484, %v491
    %v494 = vunpack.c.l.s4 1934713408
    %v495 = vunpack.c.0.s8 %v494
    %v496 = vperm.slane %v490, %v495
    %v498 = vunpack.c.l.s4 1934713408
    %v499 = vunpack.c.0.s8 %v498
    %v500 = vperm.slane %v492, %v499
    %v501 = vrot.slane %v488, 4
    %v502 = vsel %vm409, %v501, %v476
    %v503 = vrot.slane %v476, 4
    %v504 = vsel %vm409, %v488, %v503
    %v506 = vunpack.c.l.s4 1934713408
    %v507 = vunpack.c.0.s8 %v506
    %v508 = vperm.slane %v502, %v507
    %v510 = vunpack.c.l.s4 1934713408
    %v511 = vunpack.c.0.s8 %v510
    %v512 = vperm.slane %v504, %v511
    %v513 = vrot.slane %v496, 4
    %v514 = vsel %vm409, 0.0, %v513
    %v515 = vrot.slane %v500, 4
    %v516 = vsel %vm409, 0.0, %v515
    %v517 = vrot.slane %v508, 4
    %v518 = vsel %vm409, 0.0, %v517
    %v519 = vrot.slane %v512, 4
    %v520 = vsel %vm409, 0.0, %v519
    %v521 = vsel %vm409, %v459, %v440
    %v523 = vunpack.c.l.s4 1983009808
    %v524 = vunpack.c.0.s8 %v523
    %v525 = vperm.slane %v521, %v524
    %v526 = vrot.slane %v460, 4
    %v527 = vsel %vm409, %v526, %v458
    %v529 = vunpack.c.l.s4 1983009808
    %v530 = vunpack.c.0.s8 %v529
    %v531 = vperm.slane %v527, %v530
    %v532 = vsel %vm409, %v463, %v452
    %v534 = vunpack.c.l.s4 1983009808
    %v535 = vunpack.c.0.s8 %v534
    %v536 = vperm.slane %v532, %v535
    %v537 = vrot.slane %v464, 4
    %v538 = vsel %vm409, %v537, %v462
    %v540 = vunpack.c.l.s4 1983009808
    %v541 = vunpack.c.0.s8 %v540
    %v542 = vperm.slane %v538, %v541
    %v543 = vrot.slane %v531, 4
    %v544 = vsel %vm409, %v543, %v525
    %v545 = vrot.slane %v525, 4
    %v546 = vsel %vm409, %v531, %v545
    %v548 = vunpack.c.l.s4 1934713408
    %v549 = vunpack.c.0.s8 %v548
    %v550 = vperm.slane %v544, %v549
    %v552 = vunpack.c.l.s4 1934713408
    %v553 = vunpack.c.0.s8 %v552
    %v554 = vperm.slane %v546, %v553
    %v555 = vrot.slane %v542, 4
    %v556 = vsel %vm409, %v555, %v536
    %v557 = vrot.slane %v536, 4
    %v558 = vsel %vm409, %v542, %v557
    %v560 = vunpack.c.l.s4 1934713408
    %v561 = vunpack.c.0.s8 %v560
    %v562 = vperm.slane %v556, %v561
    %v564 = vunpack.c.l.s4 1934713408
    %v565 = vunpack.c.0.s8 %v564
    %v566 = vperm.slane %v558, %v565
    %v567 = vrot.slane %v562, 4
    %v568 = vsel %vm409, %v567, %v550
    %v569 = vrot.slane %v550, 4
    %v570 = vsel %vm409, %v562, %v569
    %v571 = vrot.slane %v566, 4
    %v572 = vsel %vm409, %v571, %v554
    %v573 = vrot.slane %v554, 4
    %v574 = vsel %vm409, %v566, %v573
    %v575 = vsel %vm409, %v515, %v496
    %v577 = vunpack.c.l.s4 1983009808
    %v578 = vunpack.c.0.s8 %v577
    %v579 = vperm.slane %v575, %v578
    %v580 = vrot.slane %v516, 4
    %v581 = vsel %vm409, %v580, %v514
    %v583 = vunpack.c.l.s4 1983009808
    %v584 = vunpack.c.0.s8 %v583
    %v585 = vperm.slane %v581, %v584
    %v586 = vsel %vm409, %v519, %v508
    %v588 = vunpack.c.l.s4 1983009808
    %v589 = vunpack.c.0.s8 %v588
    %v590 = vperm.slane %v586, %v589
    %v591 = vrot.slane %v520, 4
    %v592 = vsel %vm409, %v591, %v518
    %v594 = vunpack.c.l.s4 1983009808
    %v595 = vunpack.c.0.s8 %v594
    %v596 = vperm.slane %v592, %v595
    %v597 = vrot.slane %v585, 4
    %v598 = vsel %vm409, %v597, %v579
    %v599 = vrot.slane %v579, 4
    %v600 = vsel %vm409, %v585, %v599
    %v602 = vunpack.c.l.s4 1934713408
    %v603 = vunpack.c.0.s8 %v602
    %v604 = vperm.slane %v598, %v603
    %v606 = vunpack.c.l.s4 1934713408
    %v607 = vunpack.c.0.s8 %v606
    %v608 = vperm.slane %v600, %v607
    %v609 = vrot.slane %v596, 4
    %v610 = vsel %vm409, %v609, %v590
    %v611 = vrot.slane %v590, 4
    %v612 = vsel %vm409, %v596, %v611
    %v614 = vunpack.c.l.s4 1934713408
    %v615 = vunpack.c.0.s8 %v614
    %v616 = vperm.slane %v610, %v615
    %v618 = vunpack.c.l.s4 1934713408
    %v619 = vunpack.c.0.s8 %v618
    %v620 = vperm.slane %v612, %v619
    %v621 = vrot.slane %v616, 4
    %v622 = vsel %vm409, %v621, %v604
    %v623 = vrot.slane %v604, 4
    %v624 = vsel %vm409, %v616, %v623
    %v625 = vrot.slane %v620, 4
    %v626 = vsel %vm409, %v625, %v608
    %v627 = vrot.slane %v608, 4
    %v628 = vsel %vm409, %v620, %v627
    %v629 = vpack.c.bf16 %v568, %v568
    %v630 = vpack.c.bf16 %v570, %v570
    %v631 = vpack.c.bf16 %v572, %v572
    %v632 = vpack.c.bf16 %v574, %v574
    %v633 = vpack.c.bf16 %v622, %v622
    %v634 = vpack.c.bf16 %v624, %v624
    %v635 = vpack.c.bf16 %v626, %v626
    %v636 = vpack.c.bf16 %v628, %v628
    %643 = vrot.lane.b32.xlu0 %v350, 96
    %v644 = vpop.permute.xlu0 %643
    %645 = vrot.lane.b32.xlu0 %v352, 96
    %v646 = vpop.permute.xlu0 %645
    %647 = vrot.lane.b32.xlu0 %v355, 96
    %v648 = vpop.permute.xlu0 %647
    %649 = vrot.lane.b32.xlu0 %v357, 96
    %v650 = vpop.permute.xlu0 %649
    %651 = vrot.lane.b32.xlu0 %v360, 96
    %v652 = vpop.permute.xlu0 %651
    %653 = vrot.lane.b32.xlu0 %v362, 96
    %v654 = vpop.permute.xlu0 %653
    %661 = vrot.lane.b32.xlu0 %v350, 64
    %v662 = vpop.permute.xlu0 %661
    %663 = vrot.lane.b32.xlu0 %v352, 64
    %v664 = vpop.permute.xlu0 %663
    %665 = vrot.lane.b32.xlu0 %v355, 64
    %v666 = vpop.permute.xlu0 %665
    %667 = vrot.lane.b32.xlu0 %v357, 64
    %v668 = vpop.permute.xlu0 %667
    %669 = vrot.lane.b32.xlu0 %v360, 64
    %v670 = vpop.permute.xlu0 %669
    %671 = vrot.lane.b32.xlu0 %v362, 64
    %v672 = vpop.permute.xlu0 %671
    %679 = vrot.lane.b32.xlu0 %v350, 32
    %v680 = vpop.permute.xlu0 %679
    %681 = vrot.lane.b32.xlu0 %v352, 32
    %v682 = vpop.permute.xlu0 %681
    %683 = vrot.lane.b32.xlu0 %v355, 32
    %v684 = vpop.permute.xlu0 %683
    %685 = vrot.lane.b32.xlu0 %v357, 32
    %v686 = vpop.permute.xlu0 %685
    %687 = vrot.lane.b32.xlu0 %v360, 32
    %v688 = vpop.permute.xlu0 %687
    %689 = vrot.lane.b32.xlu0 %v362, 32
    %v690 = vpop.permute.xlu0 %689
    %v697 = vrot.slane %v662, 4
    %v698 = vsel %vm409, %v697, %v350
    %v699 = vrot.slane %v350, 4
    %v700 = vsel %vm409, %v662, %v699
    %v702 = vunpack.c.l.s4 1983009808
    %v703 = vunpack.c.0.s8 %v702
    %v704 = vperm.slane %v698, %v703
    %v706 = vunpack.c.l.s4 1983009808
    %v707 = vunpack.c.0.s8 %v706
    %v708 = vperm.slane %v700, %v707
    %v709 = vrot.slane %v680, 4
    %v710 = vsel %vm409, %v709, %v644
    %v711 = vrot.slane %v644, 4
    %v712 = vsel %vm409, %v680, %v711
    %v714 = vunpack.c.l.s4 1983009808
    %v715 = vunpack.c.0.s8 %v714
    %v716 = vperm.slane %v710, %v715
    %v718 = vunpack.c.l.s4 1983009808
    %v719 = vunpack.c.0.s8 %v718
    %v720 = vperm.slane %v712, %v719
    %v721 = vrot.slane %v716, 4
    %v722 = vsel %vm409, %v721, %v704
    %v723 = vrot.slane %v704, 4
    %v724 = vsel %vm409, %v716, %v723
    %v726 = vunpack.c.l.s4 1934713408
    %v727 = vunpack.c.0.s8 %v726
    %v728 = vperm.slane %v722, %v727
    %v730 = vunpack.c.l.s4 1934713408
    %v731 = vunpack.c.0.s8 %v730
    %v732 = vperm.slane %v724, %v731
    %v733 = vrot.slane %v720, 4
    %v734 = vsel %vm409, %v733, %v708
    %v735 = vrot.slane %v708, 4
    %v736 = vsel %vm409, %v720, %v735
    %v738 = vunpack.c.l.s4 1934713408
    %v739 = vunpack.c.0.s8 %v738
    %v740 = vperm.slane %v734, %v739
    %v742 = vunpack.c.l.s4 1934713408
    %v743 = vunpack.c.0.s8 %v742
    %v744 = vperm.slane %v736, %v743
    %v745 = vrot.slane %v728, 4
    %v746 = vsel %vm409, 0.0, %v745
    %v747 = vrot.slane %v732, 4
    %v748 = vsel %vm409, 0.0, %v747
    %v749 = vrot.slane %v740, 4
    %v750 = vsel %vm409, 0.0, %v749
    %v751 = vrot.slane %v744, 4
    %v752 = vsel %vm409, 0.0, %v751
    %v753 = vrot.slane %v664, 4
    %v754 = vsel %vm409, %v753, %v352
    %v755 = vrot.slane %v352, 4
    %v756 = vsel %vm409, %v664, %v755
    %v758 = vunpack.c.l.s4 1983009808
    %v759 = vunpack.c.0.s8 %v758
    %v760 = vperm.slane %v754, %v759
    %v762 = vunpack.c.l.s4 1983009808
    %v763 = vunpack.c.0.s8 %v762
    %v764 = vperm.slane %v756, %v763
    %v765 = vrot.slane %v682, 4
    %v766 = vsel %vm409, %v765, %v646
    %v767 = vrot.slane %v646, 4
    %v768 = vsel %vm409, %v682, %v767
    %v770 = vunpack.c.l.s4 1983009808
    %v771 = vunpack.c.0.s8 %v770
    %v772 = vperm.slane %v766, %v771
    %v774 = vunpack.c.l.s4 1983009808
    %v775 = vunpack.c.0.s8 %v774
    %v776 = vperm.slane %v768, %v775
    %v777 = vrot.slane %v772, 4
    %v778 = vsel %vm409, %v777, %v760
    %v779 = vrot.slane %v760, 4
    %v780 = vsel %vm409, %v772, %v779
    %v782 = vunpack.c.l.s4 1934713408
    %v783 = vunpack.c.0.s8 %v782
    %v784 = vperm.slane %v778, %v783
    %v786 = vunpack.c.l.s4 1934713408
    %v787 = vunpack.c.0.s8 %v786
    %v788 = vperm.slane %v780, %v787
    %v789 = vrot.slane %v776, 4
    %v790 = vsel %vm409, %v789, %v764
    %v791 = vrot.slane %v764, 4
    %v792 = vsel %vm409, %v776, %v791
    %v794 = vunpack.c.l.s4 1934713408
    %v795 = vunpack.c.0.s8 %v794
    %v796 = vperm.slane %v790, %v795
    %v798 = vunpack.c.l.s4 1934713408
    %v799 = vunpack.c.0.s8 %v798
    %v800 = vperm.slane %v792, %v799
    %v801 = vrot.slane %v784, 4
    %v802 = vsel %vm409, 0.0, %v801
    %v803 = vrot.slane %v788, 4
    %v804 = vsel %vm409, 0.0, %v803
    %v805 = vrot.slane %v796, 4
    %v806 = vsel %vm409, 0.0, %v805
    %v807 = vrot.slane %v800, 4
    %v808 = vsel %vm409, 0.0, %v807
    %v809 = vrot.slane %v666, 4
    %v810 = vsel %vm409, %v809, %v355
    %v811 = vrot.slane %v355, 4
    %v812 = vsel %vm409, %v666, %v811
    %v814 = vunpack.c.l.s4 1983009808
    %v815 = vunpack.c.0.s8 %v814
    %v816 = vperm.slane %v810, %v815
    %v818 = vunpack.c.l.s4 1983009808
    %v819 = vunpack.c.0.s8 %v818
    %v820 = vperm.slane %v812, %v819
    %v821 = vrot.slane %v684, 4
    %v822 = vsel %vm409, %v821, %v648
    %v823 = vrot.slane %v648, 4
    %v824 = vsel %vm409, %v684, %v823
    %v826 = vunpack.c.l.s4 1983009808
    %v827 = vunpack.c.0.s8 %v826
    %v828 = vperm.slane %v822, %v827
    %v830 = vunpack.c.l.s4 1983009808
    %v831 = vunpack.c.0.s8 %v830
    %v832 = vperm.slane %v824, %v831
    %v833 = vrot.slane %v828, 4
    %v834 = vsel %vm409, %v833, %v816
    %v835 = vrot.slane %v816, 4
    %v836 = vsel %vm409, %v828, %v835
    %v838 = vunpack.c.l.s4 1934713408
    %v839 = vunpack.c.0.s8 %v838
    %v840 = vperm.slane %v834, %v839
    %v842 = vunpack.c.l.s4 1934713408
    %v843 = vunpack.c.0.s8 %v842
    %v844 = vperm.slane %v836, %v843
    %v845 = vrot.slane %v832, 4
    %v846 = vsel %vm409, %v845, %v820
    %v847 = vrot.slane %v820, 4
    %v848 = vsel %vm409, %v832, %v847
    %v850 = vunpack.c.l.s4 1934713408
    %v851 = vunpack.c.0.s8 %v850
    %v852 = vperm.slane %v846, %v851
    %v854 = vunpack.c.l.s4 1934713408
    %v855 = vunpack.c.0.s8 %v854
    %v856 = vperm.slane %v848, %v855
    %v857 = vrot.slane %v840, 4
    %v858 = vsel %vm409, 0.0, %v857
    %v859 = vrot.slane %v844, 4
    %v860 = vsel %vm409, 0.0, %v859
    %v861 = vrot.slane %v852, 4
    %v862 = vsel %vm409, 0.0, %v861
    %v863 = vrot.slane %v856, 4
    %v864 = vsel %vm409, 0.0, %v863
    %v865 = vrot.slane %v668, 4
    %v866 = vsel %vm409, %v865, %v357
    %v867 = vrot.slane %v357, 4
    %v868 = vsel %vm409, %v668, %v867
    %v870 = vunpack.c.l.s4 1983009808
    %v871 = vunpack.c.0.s8 %v870
    %v872 = vperm.slane %v866, %v871
    %v874 = vunpack.c.l.s4 1983009808
    %v875 = vunpack.c.0.s8 %v874
    %v876 = vperm.slane %v868, %v875
    %v877 = vrot.slane %v686, 4
    %v878 = vsel %vm409, %v877, %v650
    %v879 = vrot.slane %v650, 4
    %v880 = vsel %vm409, %v686, %v879
    %v882 = vunpack.c.l.s4 1983009808
    %v883 = vunpack.c.0.s8 %v882
    %v884 = vperm.slane %v878, %v883
    %v886 = vunpack.c.l.s4 1983009808
    %v887 = vunpack.c.0.s8 %v886
    %v888 = vperm.slane %v880, %v887
    %v889 = vrot.slane %v884, 4
    %v890 = vsel %vm409, %v889, %v872
    %v891 = vrot.slane %v872, 4
    %v892 = vsel %vm409, %v884, %v891
    %v894 = vunpack.c.l.s4 1934713408
    %v895 = vunpack.c.0.s8 %v894
    %v896 = vperm.slane %v890, %v895
    %v898 = vunpack.c.l.s4 1934713408
    %v899 = vunpack.c.0.s8 %v898
    %v900 = vperm.slane %v892, %v899
    %v901 = vrot.slane %v888, 4
    %v902 = vsel %vm409, %v901, %v876
    %v903 = vrot.slane %v876, 4
    %v904 = vsel %vm409, %v888, %v903
    %v906 = vunpack.c.l.s4 1934713408
    %v907 = vunpack.c.0.s8 %v906
    %v908 = vperm.slane %v902, %v907
    %v910 = vunpack.c.l.s4 1934713408
    %v911 = vunpack.c.0.s8 %v910
    %v912 = vperm.slane %v904, %v911
    %v913 = vrot.slane %v896, 4
    %v914 = vsel %vm409, 0.0, %v913
    %v915 = vrot.slane %v900, 4
    %v916 = vsel %vm409, 0.0, %v915
    %v917 = vrot.slane %v908, 4
    %v918 = vsel %vm409, 0.0, %v917
    %v919 = vrot.slane %v912, 4
    %v920 = vsel %vm409, 0.0, %v919
    %v921 = vrot.slane %v670, 4
    %v922 = vsel %vm409, %v921, %v360
    %v923 = vrot.slane %v360, 4
    %v924 = vsel %vm409, %v670, %v923
    %v926 = vunpack.c.l.s4 1983009808
    %v927 = vunpack.c.0.s8 %v926
    %v928 = vperm.slane %v922, %v927
    %v930 = vunpack.c.l.s4 1983009808
    %v931 = vunpack.c.0.s8 %v930
    %v932 = vperm.slane %v924, %v931
    %v933 = vrot.slane %v688, 4
    %v934 = vsel %vm409, %v933, %v652
    %v935 = vrot.slane %v652, 4
    %v936 = vsel %vm409, %v688, %v935
    %v938 = vunpack.c.l.s4 1983009808
    %v939 = vunpack.c.0.s8 %v938
    %v940 = vperm.slane %v934, %v939
    %v942 = vunpack.c.l.s4 1983009808
    %v943 = vunpack.c.0.s8 %v942
    %v944 = vperm.slane %v936, %v943
    %v945 = vrot.slane %v940, 4
    %v946 = vsel %vm409, %v945, %v928
    %v947 = vrot.slane %v928, 4
    %v948 = vsel %vm409, %v940, %v947
    %v950 = vunpack.c.l.s4 1934713408
    %v951 = vunpack.c.0.s8 %v950
    %v952 = vperm.slane %v946, %v951
    %v954 = vunpack.c.l.s4 1934713408
    %v955 = vunpack.c.0.s8 %v954
    %v956 = vperm.slane %v948, %v955
    %v957 = vrot.slane %v944, 4
    %v958 = vsel %vm409, %v957, %v932
    %v959 = vrot.slane %v932, 4
    %v960 = vsel %vm409, %v944, %v959
    %v962 = vunpack.c.l.s4 1934713408
    %v963 = vunpack.c.0.s8 %v962
    %v964 = vperm.slane %v958, %v963
    %v966 = vunpack.c.l.s4 1934713408
    %v967 = vunpack.c.0.s8 %v966
    %v968 = vperm.slane %v960, %v967
    %v969 = vrot.slane %v952, 4
    %v970 = vsel %vm409, 0.0, %v969
    %v971 = vrot.slane %v956, 4
    %v972 = vsel %vm409, 0.0, %v971
    %v973 = vrot.slane %v964, 4
    %v974 = vsel %vm409, 0.0, %v973
    %v975 = vrot.slane %v968, 4
    %v976 = vsel %vm409, 0.0, %v975
    %v977 = vrot.slane %v672, 4
    %v978 = vsel %vm409, %v977, %v362
    %v979 = vrot.slane %v362, 4
    %v980 = vsel %vm409, %v672, %v979
    %v982 = vunpack.c.l.s4 1983009808
    %v983 = vunpack.c.0.s8 %v982
    %v984 = vperm.slane %v978, %v983
    %v986 = vunpack.c.l.s4 1983009808
    %v987 = vunpack.c.0.s8 %v986
    %v988 = vperm.slane %v980, %v987
    %v989 = vrot.slane %v690, 4
    %v990 = vsel %vm409, %v989, %v654
    %v991 = vrot.slane %v654, 4
    %v992 = vsel %vm409, %v690, %v991
    %v994 = vunpack.c.l.s4 1983009808
    %v995 = vunpack.c.0.s8 %v994
    %v996 = vperm.slane %v990, %v995
    %v998 = vunpack.c.l.s4 1983009808
    %v999 = vunpack.c.0.s8 %v998
    %v1000 = vperm.slane %v992, %v999
    %v1001 = vrot.slane %v996, 4
    %v1002 = vsel %vm409, %v1001, %v984
    %v1003 = vrot.slane %v984, 4
    %v1004 = vsel %vm409, %v996, %v1003
    %v1006 = vunpack.c.l.s4 1934713408
    %v1007 = vunpack.c.0.s8 %v1006
    %v1008 = vperm.slane %v1002, %v1007
    %v1010 = vunpack.c.l.s4 1934713408
    %v1011 = vunpack.c.0.s8 %v1010
    %v1012 = vperm.slane %v1004, %v1011
    %v1013 = vrot.slane %v1000, 4
    %v1014 = vsel %vm409, %v1013, %v988
    %v1015 = vrot.slane %v988, 4
    %v1016 = vsel %vm409, %v1000, %v1015
    %v1018 = vunpack.c.l.s4 1934713408
    %v1019 = vunpack.c.0.s8 %v1018
    %v1020 = vperm.slane %v1014, %v1019
    %v1022 = vunpack.c.l.s4 1934713408
    %v1023 = vunpack.c.0.s8 %v1022
    %v1024 = vperm.slane %v1016, %v1023
    %v1025 = vrot.slane %v1008, 4
    %v1026 = vsel %vm409, 0.0, %v1025
    %v1027 = vrot.slane %v1012, 4
    %v1028 = vsel %vm409, 0.0, %v1027
    %v1029 = vrot.slane %v1020, 4
    %v1030 = vsel %vm409, 0.0, %v1029
    %v1031 = vrot.slane %v1024, 4
    %v1032 = vsel %vm409, 0.0, %v1031
    %v1033 = vsel %vm409, %v747, %v728
    %v1035 = vunpack.c.l.s4 1983009808
    %v1036 = vunpack.c.0.s8 %v1035
    %v1037 = vperm.slane %v1033, %v1036
    %v1038 = vrot.slane %v748, 4
    %v1039 = vsel %vm409, %v1038, %v746
    %v1041 = vunpack.c.l.s4 1983009808
    %v1042 = vunpack.c.0.s8 %v1041
    %v1043 = vperm.slane %v1039, %v1042
    %v1044 = vsel %vm409, %v751, %v740
    %v1046 = vunpack.c.l.s4 1983009808
    %v1047 = vunpack.c.0.s8 %v1046
    %v1048 = vperm.slane %v1044, %v1047
    %v1049 = vrot.slane %v752, 4
    %v1050 = vsel %vm409, %v1049, %v750
    %v1052 = vunpack.c.l.s4 1983009808
    %v1053 = vunpack.c.0.s8 %v1052
    %v1054 = vperm.slane %v1050, %v1053
    %v1055 = vrot.slane %v1043, 4
    %v1056 = vsel %vm409, %v1055, %v1037
    %v1057 = vrot.slane %v1037, 4
    %v1058 = vsel %vm409, %v1043, %v1057
    %v1060 = vunpack.c.l.s4 1934713408
    %v1061 = vunpack.c.0.s8 %v1060
    %v1062 = vperm.slane %v1056, %v1061
    %v1064 = vunpack.c.l.s4 1934713408
    %v1065 = vunpack.c.0.s8 %v1064
    %v1066 = vperm.slane %v1058, %v1065
    %v1067 = vrot.slane %v1054, 4
    %v1068 = vsel %vm409, %v1067, %v1048
    %v1069 = vrot.slane %v1048, 4
    %v1070 = vsel %vm409, %v1054, %v1069
    %v1072 = vunpack.c.l.s4 1934713408
    %v1073 = vunpack.c.0.s8 %v1072
    %v1074 = vperm.slane %v1068, %v1073
    %v1076 = vunpack.c.l.s4 1934713408
    %v1077 = vunpack.c.0.s8 %v1076
    %v1078 = vperm.slane %v1070, %v1077
    %v1079 = vrot.slane %v1074, 4
    %v1080 = vsel %vm409, %v1079, %v1062
    %v1081 = vrot.slane %v1062, 4
    %v1082 = vsel %vm409, %v1074, %v1081
    %v1083 = vrot.slane %v1078, 4
    %v1084 = vsel %vm409, %v1083, %v1066
    %v1085 = vrot.slane %v1066, 4
    %v1086 = vsel %vm409, %v1078, %v1085
    %v1087 = vsel %vm409, %v803, %v784
    %v1089 = vunpack.c.l.s4 1983009808
    %v1090 = vunpack.c.0.s8 %v1089
    %v1091 = vperm.slane %v1087, %v1090
    %v1092 = vrot.slane %v804, 4
    %v1093 = vsel %vm409, %v1092, %v802
    %v1095 = vunpack.c.l.s4 1983009808
    %v1096 = vunpack.c.0.s8 %v1095
    %v1097 = vperm.slane %v1093, %v1096
    %v1098 = vsel %vm409, %v807, %v796
    %v1100 = vunpack.c.l.s4 1983009808
    %v1101 = vunpack.c.0.s8 %v1100
    %v1102 = vperm.slane %v1098, %v1101
    %v1103 = vrot.slane %v808, 4
    %v1104 = vsel %vm409, %v1103, %v806
    %v1106 = vunpack.c.l.s4 1983009808
    %v1107 = vunpack.c.0.s8 %v1106
    %v1108 = vperm.slane %v1104, %v1107
    %v1109 = vrot.slane %v1097, 4
    %v1110 = vsel %vm409, %v1109, %v1091
    %v1111 = vrot.slane %v1091, 4
    %v1112 = vsel %vm409, %v1097, %v1111
    %v1114 = vunpack.c.l.s4 1934713408
    %v1115 = vunpack.c.0.s8 %v1114
    %v1116 = vperm.slane %v1110, %v1115
    %v1118 = vunpack.c.l.s4 1934713408
    %v1119 = vunpack.c.0.s8 %v1118
    %v1120 = vperm.slane %v1112, %v1119
    %v1121 = vrot.slane %v1108, 4
    %v1122 = vsel %vm409, %v1121, %v1102
    %v1123 = vrot.slane %v1102, 4
    %v1124 = vsel %vm409, %v1108, %v1123
    %v1126 = vunpack.c.l.s4 1934713408
    %v1127 = vunpack.c.0.s8 %v1126
    %v1128 = vperm.slane %v1122, %v1127
    %v1130 = vunpack.c.l.s4 1934713408
    %v1131 = vunpack.c.0.s8 %v1130
    %v1132 = vperm.slane %v1124, %v1131
    %v1133 = vrot.slane %v1128, 4
    %v1134 = vsel %vm409, %v1133, %v1116
    %v1135 = vrot.slane %v1116, 4
    %v1136 = vsel %vm409, %v1128, %v1135
    %v1137 = vrot.slane %v1132, 4
    %v1138 = vsel %vm409, %v1137, %v1120
    %v1139 = vrot.slane %v1120, 4
    %v1140 = vsel %vm409, %v1132, %v1139
    %v1141 = vsel %vm409, %v859, %v840
    %v1143 = vunpack.c.l.s4 1983009808
    %v1144 = vunpack.c.0.s8 %v1143
    %v1145 = vperm.slane %v1141, %v1144
    %v1146 = vrot.slane %v860, 4
    %v1147 = vsel %vm409, %v1146, %v858
    %v1149 = vunpack.c.l.s4 1983009808
    %v1150 = vunpack.c.0.s8 %v1149
    %v1151 = vperm.slane %v1147, %v1150
    %v1152 = vsel %vm409, %v863, %v852
    %v1154 = vunpack.c.l.s4 1983009808
    %v1155 = vunpack.c.0.s8 %v1154
    %v1156 = vperm.slane %v1152, %v1155
    %v1157 = vrot.slane %v864, 4
    %v1158 = vsel %vm409, %v1157, %v862
    %v1160 = vunpack.c.l.s4 1983009808
    %v1161 = vunpack.c.0.s8 %v1160
    %v1162 = vperm.slane %v1158, %v1161
    %v1163 = vrot.slane %v1151, 4
    %v1164 = vsel %vm409, %v1163, %v1145
    %v1165 = vrot.slane %v1145, 4
    %v1166 = vsel %vm409, %v1151, %v1165
    %v1168 = vunpack.c.l.s4 1934713408
    %v1169 = vunpack.c.0.s8 %v1168
    %v1170 = vperm.slane %v1164, %v1169
    %v1172 = vunpack.c.l.s4 1934713408
    %v1173 = vunpack.c.0.s8 %v1172
    %v1174 = vperm.slane %v1166, %v1173
    %v1175 = vrot.slane %v1162, 4
    %v1176 = vsel %vm409, %v1175, %v1156
    %v1177 = vrot.slane %v1156, 4
    %v1178 = vsel %vm409, %v1162, %v1177
    %v1180 = vunpack.c.l.s4 1934713408
    %v1181 = vunpack.c.0.s8 %v1180
    %v1182 = vperm.slane %v1176, %v1181
    %v1184 = vunpack.c.l.s4 1934713408
    %v1185 = vunpack.c.0.s8 %v1184
    %v1186 = vperm.slane %v1178, %v1185
    %v1187 = vrot.slane %v1182, 4
    %v1188 = vsel %vm409, %v1187, %v1170
    %v1189 = vrot.slane %v1170, 4
    %v1190 = vsel %vm409, %v1182, %v1189
    %v1191 = vrot.slane %v1186, 4
    %v1192 = vsel %vm409, %v1191, %v1174
    %v1193 = vrot.slane %v1174, 4
    %v1194 = vsel %vm409, %v1186, %v1193
    %v1195 = vsel %vm409, %v915, %v896
    %v1197 = vunpack.c.l.s4 1983009808
    %v1198 = vunpack.c.0.s8 %v1197
    %v1199 = vperm.slane %v1195, %v1198
    %v1200 = vrot.slane %v916, 4
    %v1201 = vsel %vm409, %v1200, %v914
    %v1203 = vunpack.c.l.s4 1983009808
    %v1204 = vunpack.c.0.s8 %v1203
    %v1205 = vperm.slane %v1201, %v1204
    %v1206 = vsel %vm409, %v919, %v908
    %v1208 = vunpack.c.l.s4 1983009808
    %v1209 = vunpack.c.0.s8 %v1208
    %v1210 = vperm.slane %v1206, %v1209
    %v1211 = vrot.slane %v920, 4
    %v1212 = vsel %vm409, %v1211, %v918
    %v1214 = vunpack.c.l.s4 1983009808
    %v1215 = vunpack.c.0.s8 %v1214
    %v1216 = vperm.slane %v1212, %v1215
    %v1217 = vrot.slane %v1205, 4
    %v1218 = vsel %vm409, %v1217, %v1199
    %v1219 = vrot.slane %v1199, 4
    %v1220 = vsel %vm409, %v1205, %v1219
    %v1222 = vunpack.c.l.s4 1934713408
    %v1223 = vunpack.c.0.s8 %v1222
    %v1224 = vperm.slane %v1218, %v1223
    %v1226 = vunpack.c.l.s4 1934713408
    %v1227 = vunpack.c.0.s8 %v1226
    %v1228 = vperm.slane %v1220, %v1227
    %v1229 = vrot.slane %v1216, 4
    %v1230 = vsel %vm409, %v1229, %v1210
    %v1231 = vrot.slane %v1210, 4
    %v1232 = vsel %vm409, %v1216, %v1231
    %v1234 = vunpack.c.l.s4 1934713408
    %v1235 = vunpack.c.0.s8 %v1234
    %v1236 = vperm.slane %v1230, %v1235
    %v1238 = vunpack.c.l.s4 1934713408
    %v1239 = vunpack.c.0.s8 %v1238
    %v1240 = vperm.slane %v1232, %v1239
    %v1241 = vrot.slane %v1236, 4
    %v1242 = vsel %vm409, %v1241, %v1224
    %v1243 = vrot.slane %v1224, 4
    %v1244 = vsel %vm409, %v1236, %v1243
    %v1245 = vrot.slane %v1240, 4
    %v1246 = vsel %vm409, %v1245, %v1228
    %v1247 = vrot.slane %v1228, 4
    %v1248 = vsel %vm409, %v1240, %v1247
    %v1249 = vsel %vm409, %v971, %v952
    %v1251 = vunpack.c.l.s4 1983009808
    %v1252 = vunpack.c.0.s8 %v1251
    %v1253 = vperm.slane %v1249, %v1252
    %v1254 = vrot.slane %v972, 4
    %v1255 = vsel %vm409, %v1254, %v970
    %v1257 = vunpack.c.l.s4 1983009808
    %v1258 = vunpack.c.0.s8 %v1257
    %v1259 = vperm.slane %v1255, %v1258
    %v1260 = vsel %vm409, %v975, %v964
    %v1262 = vunpack.c.l.s4 1983009808
    %v1263 = vunpack.c.0.s8 %v1262
    %v1264 = vperm.slane %v1260, %v1263
    %v1265 = vrot.slane %v976, 4
    %v1266 = vsel %vm409, %v1265, %v974
    %v1268 = vunpack.c.l.s4 1983009808
    %v1269 = vunpack.c.0.s8 %v1268
    %v1270 = vperm.slane %v1266, %v1269
    %v1271 = vrot.slane %v1259, 4
    %v1272 = vsel %vm409, %v1271, %v1253
    %v1273 = vrot.slane %v1253, 4
    %v1274 = vsel %vm409, %v1259, %v1273
    %v1276 = vunpack.c.l.s4 1934713408
    %v1277 = vunpack.c.0.s8 %v1276
    %v1278 = vperm.slane %v1272, %v1277
    %v1280 = vunpack.c.l.s4 1934713408
    %v1281 = vunpack.c.0.s8 %v1280
    %v1282 = vperm.slane %v1274, %v1281
    %v1283 = vrot.slane %v1270, 4
    %v1284 = vsel %vm409, %v1283, %v1264
    %v1285 = vrot.slane %v1264, 4
    %v1286 = vsel %vm409, %v1270, %v1285
    %v1288 = vunpack.c.l.s4 1934713408
    %v1289 = vunpack.c.0.s8 %v1288
    %v1290 = vperm.slane %v1284, %v1289
    %v1292 = vunpack.c.l.s4 1934713408
    %v1293 = vunpack.c.0.s8 %v1292
    %v1294 = vperm.slane %v1286, %v1293
    %v1295 = vrot.slane %v1290, 4
    %v1296 = vsel %vm409, %v1295, %v1278
    %v1297 = vrot.slane %v1278, 4
    %v1298 = vsel %vm409, %v1290, %v1297
    %v1299 = vrot.slane %v1294, 4
    %v1300 = vsel %vm409, %v1299, %v1282
    %v1301 = vrot.slane %v1282, 4
    %v1302 = vsel %vm409, %v1294, %v1301
    %v1303 = vsel %vm409, %v1027, %v1008
    %v1305 = vunpack.c.l.s4 1983009808
    %v1306 = vunpack.c.0.s8 %v1305
    %v1307 = vperm.slane %v1303, %v1306
    %v1308 = vrot.slane %v1028, 4
    %v1309 = vsel %vm409, %v1308, %v1026
    %v1311 = vunpack.c.l.s4 1983009808
    %v1312 = vunpack.c.0.s8 %v1311
    %v1313 = vperm.slane %v1309, %v1312
    %v1314 = vsel %vm409, %v1031, %v1020
    %v1316 = vunpack.c.l.s4 1983009808
    %v1317 = vunpack.c.0.s8 %v1316
    %v1318 = vperm.slane %v1314, %v1317
    %v1319 = vrot.slane %v1032, 4
    %v1320 = vsel %vm409, %v1319, %v1030
    %v1322 = vunpack.c.l.s4 1983009808
    %v1323 = vunpack.c.0.s8 %v1322
    %v1324 = vperm.slane %v1320, %v1323
    %v1325 = vrot.slane %v1313, 4
    %v1326 = vsel %vm409, %v1325, %v1307
    %v1327 = vrot.slane %v1307, 4
    %v1328 = vsel %vm409, %v1313, %v1327
    %v1330 = vunpack.c.l.s4 1934713408
    %v1331 = vunpack.c.0.s8 %v1330
    %v1332 = vperm.slane %v1326, %v1331
    %v1334 = vunpack.c.l.s4 1934713408
    %v1335 = vunpack.c.0.s8 %v1334
    %v1336 = vperm.slane %v1328, %v1335
    %v1337 = vrot.slane %v1324, 4
    %v1338 = vsel %vm409, %v1337, %v1318
    %v1339 = vrot.slane %v1318, 4
    %v1340 = vsel %vm409, %v1324, %v1339
    %v1342 = vunpack.c.l.s4 1934713408
    %v1343 = vunpack.c.0.s8 %v1342
    %v1344 = vperm.slane %v1338, %v1343
    %v1346 = vunpack.c.l.s4 1934713408
    %v1347 = vunpack.c.0.s8 %v1346
    %v1348 = vperm.slane %v1340, %v1347
    %v1349 = vrot.slane %v1344, 4
    %v1350 = vsel %vm409, %v1349, %v1332
    %v1351 = vrot.slane %v1332, 4
    %v1352 = vsel %vm409, %v1344, %v1351
    %v1353 = vrot.slane %v1348, 4
    %v1354 = vsel %vm409, %v1353, %v1336
    %v1355 = vrot.slane %v1336, 4
    %v1356 = vsel %vm409, %v1348, %v1355
    %v1357 = vpack.c.bf16 %v1080, %v1080
    %v1358 = vpack.c.bf16 %v1134, %v1134
    %v1359 = vpack.c.bf16 %v1188, %v1188
    %v1360 = vpack.c.bf16 %v1082, %v1082
    %v1361 = vpack.c.bf16 %v1136, %v1136
    %v1362 = vpack.c.bf16 %v1190, %v1190
    %v1363 = vpack.c.bf16 %v1084, %v1084
    %v1364 = vpack.c.bf16 %v1138, %v1138
    %v1365 = vpack.c.bf16 %v1192, %v1192
    %v1366 = vpack.c.bf16 %v1086, %v1086
    %v1367 = vpack.c.bf16 %v1140, %v1140
    %v1368 = vpack.c.bf16 %v1194, %v1194
    %v1369 = vpack.c.bf16 %v1242, %v1242
    %v1370 = vpack.c.bf16 %v1296, %v1296
    %v1371 = vpack.c.bf16 %v1350, %v1350
    %v1372 = vpack.c.bf16 %v1244, %v1244
    %v1373 = vpack.c.bf16 %v1298, %v1298
    %v1374 = vpack.c.bf16 %v1352, %v1352
    %v1375 = vpack.c.bf16 %v1246, %v1246
    %v1376 = vpack.c.bf16 %v1300, %v1300
    %v1377 = vpack.c.bf16 %v1354, %v1354
    %v1378 = vpack.c.bf16 %v1248, %v1248
    %v1379 = vpack.c.bf16 %v1302, %v1302
    %v1380 = vpack.c.bf16 %v1356, %v1356
    %1387 = vrot.lane.b32.xlu0 %v374, 96
    %v1388 = vpop.permute.xlu0 %1387
    %1389 = vrot.lane.b32.xlu0 %v376, 96
    %v1390 = vpop.permute.xlu0 %1389
    %1391 = vrot.lane.b32.xlu0 %v379, 96
    %v1392 = vpop.permute.xlu0 %1391
    %1393 = vrot.lane.b32.xlu0 %v381, 96
    %v1394 = vpop.permute.xlu0 %1393
    %1395 = vrot.lane.b32.xlu0 %v384, 96
    %v1396 = vpop.permute.xlu0 %1395
    %1397 = vrot.lane.b32.xlu0 %v386, 96
    %v1398 = vpop.permute.xlu0 %1397
    %1405 = vrot.lane.b32.xlu0 %v374, 64
    %v1406 = vpop.permute.xlu0 %1405
    %1407 = vrot.lane.b32.xlu0 %v376, 64
    %v1408 = vpop.permute.xlu0 %1407
    %1409 = vrot.lane.b32.xlu0 %v379, 64
    %v1410 = vpop.permute.xlu0 %1409
    %1411 = vrot.lane.b32.xlu0 %v381, 64
    %v1412 = vpop.permute.xlu0 %1411
    %1413 = vrot.lane.b32.xlu0 %v384, 64
    %v1414 = vpop.permute.xlu0 %1413
    %1415 = vrot.lane.b32.xlu0 %v386, 64
    %v1416 = vpop.permute.xlu0 %1415
    %1423 = vrot.lane.b32.xlu0 %v374, 32
    %v1424 = vpop.permute.xlu0 %1423
    %1425 = vrot.lane.b32.xlu0 %v376, 32
    %v1426 = vpop.permute.xlu0 %1425
    %1427 = vrot.lane.b32.xlu0 %v379, 32
    %v1428 = vpop.permute.xlu0 %1427
    %1429 = vrot.lane.b32.xlu0 %v381, 32
    %v1430 = vpop.permute.xlu0 %1429
    %1431 = vrot.lane.b32.xlu0 %v384, 32
    %v1432 = vpop.permute.xlu0 %1431
    %1433 = vrot.lane.b32.xlu0 %v386, 32
    %v1434 = vpop.permute.xlu0 %1433
    %v1441 = vrot.slane %v1406, 4
    %v1442 = vsel %vm409, %v1441, %v374
    %v1443 = vrot.slane %v374, 4
    %v1444 = vsel %vm409, %v1406, %v1443
    %v1446 = vunpack.c.l.s4 1983009808
    %v1447 = vunpack.c.0.s8 %v1446
    %v1448 = vperm.slane %v1442, %v1447
    %v1450 = vunpack.c.l.s4 1983009808
    %v1451 = vunpack.c.0.s8 %v1450
    %v1452 = vperm.slane %v1444, %v1451
    %v1453 = vrot.slane %v1424, 4
    %v1454 = vsel %vm409, %v1453, %v1388
    %v1455 = vrot.slane %v1388, 4
    %v1456 = vsel %vm409, %v1424, %v1455
    %v1458 = vunpack.c.l.s4 1983009808
    %v1459 = vunpack.c.0.s8 %v1458
    %v1460 = vperm.slane %v1454, %v1459
    %v1462 = vunpack.c.l.s4 1983009808
    %v1463 = vunpack.c.0.s8 %v1462
    %v1464 = vperm.slane %v1456, %v1463
    %v1465 = vrot.slane %v1460, 4
    %v1466 = vsel %vm409, %v1465, %v1448
    %v1467 = vrot.slane %v1448, 4
    %v1468 = vsel %vm409, %v1460, %v1467
    %v1470 = vunpack.c.l.s4 1934713408
    %v1471 = vunpack.c.0.s8 %v1470
    %v1472 = vperm.slane %v1466, %v1471
    %v1474 = vunpack.c.l.s4 1934713408
    %v1475 = vunpack.c.0.s8 %v1474
    %v1476 = vperm.slane %v1468, %v1475
    %v1477 = vrot.slane %v1464, 4
    %v1478 = vsel %vm409, %v1477, %v1452
    %v1479 = vrot.slane %v1452, 4
    %v1480 = vsel %vm409, %v1464, %v1479
    %v1482 = vunpack.c.l.s4 1934713408
    %v1483 = vunpack.c.0.s8 %v1482
    %v1484 = vperm.slane %v1478, %v1483
    %v1486 = vunpack.c.l.s4 1934713408
    %v1487 = vunpack.c.0.s8 %v1486
    %v1488 = vperm.slane %v1480, %v1487
    %v1489 = vrot.slane %v1472, 4
    %v1490 = vsel %vm409, 0.0, %v1489
    %v1491 = vrot.slane %v1476, 4
    %v1492 = vsel %vm409, 0.0, %v1491
    %v1493 = vrot.slane %v1484, 4
    %v1494 = vsel %vm409, 0.0, %v1493
    %v1495 = vrot.slane %v1488, 4
    %v1496 = vsel %vm409, 0.0, %v1495
    %v1497 = vrot.slane %v1408, 4
    %v1498 = vsel %vm409, %v1497, %v376
    %v1499 = vrot.slane %v376, 4
    %v1500 = vsel %vm409, %v1408, %v1499
    %v1502 = vunpack.c.l.s4 1983009808
    %v1503 = vunpack.c.0.s8 %v1502
    %v1504 = vperm.slane %v1498, %v1503
    %v1506 = vunpack.c.l.s4 1983009808
    %v1507 = vunpack.c.0.s8 %v1506
    %v1508 = vperm.slane %v1500, %v1507
    %v1509 = vrot.slane %v1426, 4
    %v1510 = vsel %vm409, %v1509, %v1390
    %v1511 = vrot.slane %v1390, 4
    %v1512 = vsel %vm409, %v1426, %v1511
    %v1514 = vunpack.c.l.s4 1983009808
    %v1515 = vunpack.c.0.s8 %v1514
    %v1516 = vperm.slane %v1510, %v1515
    %v1518 = vunpack.c.l.s4 1983009808
    %v1519 = vunpack.c.0.s8 %v1518
    %v1520 = vperm.slane %v1512, %v1519
    %v1521 = vrot.slane %v1516, 4
    %v1522 = vsel %vm409, %v1521, %v1504
    %v1523 = vrot.slane %v1504, 4
    %v1524 = vsel %vm409, %v1516, %v1523
    %v1526 = vunpack.c.l.s4 1934713408
    %v1527 = vunpack.c.0.s8 %v1526
    %v1528 = vperm.slane %v1522, %v1527
    %v1530 = vunpack.c.l.s4 1934713408
    %v1531 = vunpack.c.0.s8 %v1530
    %v1532 = vperm.slane %v1524, %v1531
    %v1533 = vrot.slane %v1520, 4
    %v1534 = vsel %vm409, %v1533, %v1508
    %v1535 = vrot.slane %v1508, 4
    %v1536 = vsel %vm409, %v1520, %v1535
    %v1538 = vunpack.c.l.s4 1934713408
    %v1539 = vunpack.c.0.s8 %v1538
    %v1540 = vperm.slane %v1534, %v1539
    %v1542 = vunpack.c.l.s4 1934713408
    %v1543 = vunpack.c.0.s8 %v1542
    %v1544 = vperm.slane %v1536, %v1543
    %v1545 = vrot.slane %v1528, 4
    %v1546 = vsel %vm409, 0.0, %v1545
    %v1547 = vrot.slane %v1532, 4
    %v1548 = vsel %vm409, 0.0, %v1547
    %v1549 = vrot.slane %v1540, 4
    %v1550 = vsel %vm409, 0.0, %v1549
    %v1551 = vrot.slane %v1544, 4
    %v1552 = vsel %vm409, 0.0, %v1551
    %v1553 = vrot.slane %v1410, 4
    %v1554 = vsel %vm409, %v1553, %v379
    %v1555 = vrot.slane %v379, 4
    %v1556 = vsel %vm409, %v1410, %v1555
    %v1558 = vunpack.c.l.s4 1983009808
    %v1559 = vunpack.c.0.s8 %v1558
    %v1560 = vperm.slane %v1554, %v1559
    %v1562 = vunpack.c.l.s4 1983009808
    %v1563 = vunpack.c.0.s8 %v1562
    %v1564 = vperm.slane %v1556, %v1563
    %v1565 = vrot.slane %v1428, 4
    %v1566 = vsel %vm409, %v1565, %v1392
    %v1567 = vrot.slane %v1392, 4
    %v1568 = vsel %vm409, %v1428, %v1567
    %v1570 = vunpack.c.l.s4 1983009808
    %v1571 = vunpack.c.0.s8 %v1570
    %v1572 = vperm.slane %v1566, %v1571
    %v1574 = vunpack.c.l.s4 1983009808
    %v1575 = vunpack.c.0.s8 %v1574
    %v1576 = vperm.slane %v1568, %v1575
    %v1577 = vrot.slane %v1572, 4
    %v1578 = vsel %vm409, %v1577, %v1560
    %v1579 = vrot.slane %v1560, 4
    %v1580 = vsel %vm409, %v1572, %v1579
    %v1582 = vunpack.c.l.s4 1934713408
    %v1583 = vunpack.c.0.s8 %v1582
    %v1584 = vperm.slane %v1578, %v1583
    %v1586 = vunpack.c.l.s4 1934713408
    %v1587 = vunpack.c.0.s8 %v1586
    %v1588 = vperm.slane %v1580, %v1587
    %v1589 = vrot.slane %v1576, 4
    %v1590 = vsel %vm409, %v1589, %v1564
    %v1591 = vrot.slane %v1564, 4
    %v1592 = vsel %vm409, %v1576, %v1591
    %v1594 = vunpack.c.l.s4 1934713408
    %v1595 = vunpack.c.0.s8 %v1594
    %v1596 = vperm.slane %v1590, %v1595
    %v1598 = vunpack.c.l.s4 1934713408
    %v1599 = vunpack.c.0.s8 %v1598
    %v1600 = vperm.slane %v1592, %v1599
    %v1601 = vrot.slane %v1584, 4
    %v1602 = vsel %vm409, 0.0, %v1601
    %v1603 = vrot.slane %v1588, 4
    %v1604 = vsel %vm409, 0.0, %v1603
    %v1605 = vrot.slane %v1596, 4
    %v1606 = vsel %vm409, 0.0, %v1605
    %v1607 = vrot.slane %v1600, 4
    %v1608 = vsel %vm409, 0.0, %v1607
    %v1609 = vrot.slane %v1412, 4
    %v1610 = vsel %vm409, %v1609, %v381
    %v1611 = vrot.slane %v381, 4
    %v1612 = vsel %vm409, %v1412, %v1611
    %v1614 = vunpack.c.l.s4 1983009808
    %v1615 = vunpack.c.0.s8 %v1614
    %v1616 = vperm.slane %v1610, %v1615
    %v1618 = vunpack.c.l.s4 1983009808
    %v1619 = vunpack.c.0.s8 %v1618
    %v1620 = vperm.slane %v1612, %v1619
    %v1621 = vrot.slane %v1430, 4
    %v1622 = vsel %vm409, %v1621, %v1394
    %v1623 = vrot.slane %v1394, 4
    %v1624 = vsel %vm409, %v1430, %v1623
    %v1626 = vunpack.c.l.s4 1983009808
    %v1627 = vunpack.c.0.s8 %v1626
    %v1628 = vperm.slane %v1622, %v1627
    %v1630 = vunpack.c.l.s4 1983009808
    %v1631 = vunpack.c.0.s8 %v1630
    %v1632 = vperm.slane %v1624, %v1631
    %v1633 = vrot.slane %v1628, 4
    %v1634 = vsel %vm409, %v1633, %v1616
    %v1635 = vrot.slane %v1616, 4
    %v1636 = vsel %vm409, %v1628, %v1635
    %v1638 = vunpack.c.l.s4 1934713408
    %v1639 = vunpack.c.0.s8 %v1638
    %v1640 = vperm.slane %v1634, %v1639
    %v1642 = vunpack.c.l.s4 1934713408
    %v1643 = vunpack.c.0.s8 %v1642
    %v1644 = vperm.slane %v1636, %v1643
    %v1645 = vrot.slane %v1632, 4
    %v1646 = vsel %vm409, %v1645, %v1620
    %v1647 = vrot.slane %v1620, 4
    %v1648 = vsel %vm409, %v1632, %v1647
    %v1650 = vunpack.c.l.s4 1934713408
    %v1651 = vunpack.c.0.s8 %v1650
    %v1652 = vperm.slane %v1646, %v1651
    %v1654 = vunpack.c.l.s4 1934713408
    %v1655 = vunpack.c.0.s8 %v1654
    %v1656 = vperm.slane %v1648, %v1655
    %v1657 = vrot.slane %v1640, 4
    %v1658 = vsel %vm409, 0.0, %v1657
    %v1659 = vrot.slane %v1644, 4
    %v1660 = vsel %vm409, 0.0, %v1659
    %v1661 = vrot.slane %v1652, 4
    %v1662 = vsel %vm409, 0.0, %v1661
    %v1663 = vrot.slane %v1656, 4
    %v1664 = vsel %vm409, 0.0, %v1663
    %v1665 = vrot.slane %v1414, 4
    %v1666 = vsel %vm409, %v1665, %v384
    %v1667 = vrot.slane %v384, 4
    %v1668 = vsel %vm409, %v1414, %v1667
    %v1670 = vunpack.c.l.s4 1983009808
    %v1671 = vunpack.c.0.s8 %v1670
    %v1672 = vperm.slane %v1666, %v1671
    %v1674 = vunpack.c.l.s4 1983009808
    %v1675 = vunpack.c.0.s8 %v1674
    %v1676 = vperm.slane %v1668, %v1675
    %v1677 = vrot.slane %v1432, 4
    %v1678 = vsel %vm409, %v1677, %v1396
    %v1679 = vrot.slane %v1396, 4
    %v1680 = vsel %vm409, %v1432, %v1679
    %v1682 = vunpack.c.l.s4 1983009808
    %v1683 = vunpack.c.0.s8 %v1682
    %v1684 = vperm.slane %v1678, %v1683
    %v1686 = vunpack.c.l.s4 1983009808
    %v1687 = vunpack.c.0.s8 %v1686
    %v1688 = vperm.slane %v1680, %v1687
    %v1689 = vrot.slane %v1684, 4
    %v1690 = vsel %vm409, %v1689, %v1672
    %v1691 = vrot.slane %v1672, 4
    %v1692 = vsel %vm409, %v1684, %v1691
    %v1694 = vunpack.c.l.s4 1934713408
    %v1695 = vunpack.c.0.s8 %v1694
    %v1696 = vperm.slane %v1690, %v1695
    %v1698 = vunpack.c.l.s4 1934713408
    %v1699 = vunpack.c.0.s8 %v1698
    %v1700 = vperm.slane %v1692, %v1699
    %v1701 = vrot.slane %v1688, 4
    %v1702 = vsel %vm409, %v1701, %v1676
    %v1703 = vrot.slane %v1676, 4
    %v1704 = vsel %vm409, %v1688, %v1703
    %v1706 = vunpack.c.l.s4 1934713408
    %v1707 = vunpack.c.0.s8 %v1706
    %v1708 = vperm.slane %v1702, %v1707
    %v1710 = vunpack.c.l.s4 1934713408
    %v1711 = vunpack.c.0.s8 %v1710
    %v1712 = vperm.slane %v1704, %v1711
    %v1713 = vrot.slane %v1696, 4
    %v1714 = vsel %vm409, 0.0, %v1713
    %v1715 = vrot.slane %v1700, 4
    %v1716 = vsel %vm409, 0.0, %v1715
    %v1717 = vrot.slane %v1708, 4
    %v1718 = vsel %vm409, 0.0, %v1717
    %v1719 = vrot.slane %v1712, 4
    %v1720 = vsel %vm409, 0.0, %v1719
    %v1721 = vrot.slane %v1416, 4
    %v1722 = vsel %vm409, %v1721, %v386
    %v1723 = vrot.slane %v386, 4
    %v1724 = vsel %vm409, %v1416, %v1723
    %v1726 = vunpack.c.l.s4 1983009808
    %v1727 = vunpack.c.0.s8 %v1726
    %v1728 = vperm.slane %v1722, %v1727
    %v1730 = vunpack.c.l.s4 1983009808
    %v1731 = vunpack.c.0.s8 %v1730
    %v1732 = vperm.slane %v1724, %v1731
    %v1733 = vrot.slane %v1434, 4
    %v1734 = vsel %vm409, %v1733, %v1398
    %v1735 = vrot.slane %v1398, 4
    %v1736 = vsel %vm409, %v1434, %v1735
    %v1738 = vunpack.c.l.s4 1983009808
    %v1739 = vunpack.c.0.s8 %v1738
    %v1740 = vperm.slane %v1734, %v1739
    %v1742 = vunpack.c.l.s4 1983009808
    %v1743 = vunpack.c.0.s8 %v1742
    %v1744 = vperm.slane %v1736, %v1743
    %v1745 = vrot.slane %v1740, 4
    %v1746 = vsel %vm409, %v1745, %v1728
    %v1747 = vrot.slane %v1728, 4
    %v1748 = vsel %vm409, %v1740, %v1747
    %v1750 = vunpack.c.l.s4 1934713408
    %v1751 = vunpack.c.0.s8 %v1750
    %v1752 = vperm.slane %v1746, %v1751
    %v1754 = vunpack.c.l.s4 1934713408
    %v1755 = vunpack.c.0.s8 %v1754
    %v1756 = vperm.slane %v1748, %v1755
    %v1757 = vrot.slane %v1744, 4
    %v1758 = vsel %vm409, %v1757, %v1732
    %v1759 = vrot.slane %v1732, 4
    %v1760 = vsel %vm409, %v1744, %v1759
    %v1762 = vunpack.c.l.s4 1934713408
    %v1763 = vunpack.c.0.s8 %v1762
    %v1764 = vperm.slane %v1758, %v1763
    %v1766 = vunpack.c.l.s4 1934713408
    %v1767 = vunpack.c.0.s8 %v1766
    %v1768 = vperm.slane %v1760, %v1767
    %v1769 = vrot.slane %v1752, 4
    %v1770 = vsel %vm409, 0.0, %v1769
    %v1771 = vrot.slane %v1756, 4
    %v1772 = vsel %vm409, 0.0, %v1771
    %v1773 = vrot.slane %v1764, 4
    %v1774 = vsel %vm409, 0.0, %v1773
    %v1775 = vrot.slane %v1768, 4
    %v1776 = vsel %vm409, 0.0, %v1775
    %v1777 = vsel %vm409, %v1491, %v1472
    %v1779 = vunpack.c.l.s4 1983009808
    %v1780 = vunpack.c.0.s8 %v1779
    %v1781 = vperm.slane %v1777, %v1780
    %v1782 = vrot.slane %v1492, 4
    %v1783 = vsel %vm409, %v1782, %v1490
    %v1785 = vunpack.c.l.s4 1983009808
    %v1786 = vunpack.c.0.s8 %v1785
    %v1787 = vperm.slane %v1783, %v1786
    %v1788 = vsel %vm409, %v1495, %v1484
    %v1790 = vunpack.c.l.s4 1983009808
    %v1791 = vunpack.c.0.s8 %v1790
    %v1792 = vperm.slane %v1788, %v1791
    %v1793 = vrot.slane %v1496, 4
    %v1794 = vsel %vm409, %v1793, %v1494
    %v1796 = vunpack.c.l.s4 1983009808
    %v1797 = vunpack.c.0.s8 %v1796
    %v1798 = vperm.slane %v1794, %v1797
    %v1799 = vrot.slane %v1787, 4
    %v1800 = vsel %vm409, %v1799, %v1781
    %v1801 = vrot.slane %v1781, 4
    %v1802 = vsel %vm409, %v1787, %v1801
    %v1804 = vunpack.c.l.s4 1934713408
    %v1805 = vunpack.c.0.s8 %v1804
    %v1806 = vperm.slane %v1800, %v1805
    %v1808 = vunpack.c.l.s4 1934713408
    %v1809 = vunpack.c.0.s8 %v1808
    %v1810 = vperm.slane %v1802, %v1809
    %v1811 = vrot.slane %v1798, 4
    %v1812 = vsel %vm409, %v1811, %v1792
    %v1813 = vrot.slane %v1792, 4
    %v1814 = vsel %vm409, %v1798, %v1813
    %v1816 = vunpack.c.l.s4 1934713408
    %v1817 = vunpack.c.0.s8 %v1816
    %v1818 = vperm.slane %v1812, %v1817
    %v1820 = vunpack.c.l.s4 1934713408
    %v1821 = vunpack.c.0.s8 %v1820
    %v1822 = vperm.slane %v1814, %v1821
    %v1823 = vrot.slane %v1818, 4
    %v1824 = vsel %vm409, %v1823, %v1806
    %v1825 = vrot.slane %v1806, 4
    %v1826 = vsel %vm409, %v1818, %v1825
    %v1827 = vrot.slane %v1822, 4
    %v1828 = vsel %vm409, %v1827, %v1810
    %v1829 = vrot.slane %v1810, 4
    %v1830 = vsel %vm409, %v1822, %v1829
    %v1831 = vsel %vm409, %v1547, %v1528
    %v1833 = vunpack.c.l.s4 1983009808
    %v1834 = vunpack.c.0.s8 %v1833
    %v1835 = vperm.slane %v1831, %v1834
    %v1836 = vrot.slane %v1548, 4
    %v1837 = vsel %vm409, %v1836, %v1546
    %v1839 = vunpack.c.l.s4 1983009808
    %v1840 = vunpack.c.0.s8 %v1839
    %v1841 = vperm.slane %v1837, %v1840
    %v1842 = vsel %vm409, %v1551, %v1540
    %v1844 = vunpack.c.l.s4 1983009808
    %v1845 = vunpack.c.0.s8 %v1844
    %v1846 = vperm.slane %v1842, %v1845
    %v1847 = vrot.slane %v1552, 4
    %v1848 = vsel %vm409, %v1847, %v1550
    %v1850 = vunpack.c.l.s4 1983009808
    %v1851 = vunpack.c.0.s8 %v1850
    %v1852 = vperm.slane %v1848, %v1851
    %v1853 = vrot.slane %v1841, 4
    %v1854 = vsel %vm409, %v1853, %v1835
    %v1855 = vrot.slane %v1835, 4
    %v1856 = vsel %vm409, %v1841, %v1855
    %v1858 = vunpack.c.l.s4 1934713408
    %v1859 = vunpack.c.0.s8 %v1858
    %v1860 = vperm.slane %v1854, %v1859
    %v1862 = vunpack.c.l.s4 1934713408
    %v1863 = vunpack.c.0.s8 %v1862
    %v1864 = vperm.slane %v1856, %v1863
    %v1865 = vrot.slane %v1852, 4
    %v1866 = vsel %vm409, %v1865, %v1846
    %v1867 = vrot.slane %v1846, 4
    %v1868 = vsel %vm409, %v1852, %v1867
    %v1870 = vunpack.c.l.s4 1934713408
    %v1871 = vunpack.c.0.s8 %v1870
    %v1872 = vperm.slane %v1866, %v1871
    %v1874 = vunpack.c.l.s4 1934713408
    %v1875 = vunpack.c.0.s8 %v1874
    %v1876 = vperm.slane %v1868, %v1875
    %v1877 = vrot.slane %v1872, 4
    %v1878 = vsel %vm409, %v1877, %v1860
    %v1879 = vrot.slane %v1860, 4
    %v1880 = vsel %vm409, %v1872, %v1879
    %v1881 = vrot.slane %v1876, 4
    %v1882 = vsel %vm409, %v1881, %v1864
    %v1883 = vrot.slane %v1864, 4
    %v1884 = vsel %vm409, %v1876, %v1883
    %v1885 = vsel %vm409, %v1603, %v1584
    %v1887 = vunpack.c.l.s4 1983009808
    %v1888 = vunpack.c.0.s8 %v1887
    %v1889 = vperm.slane %v1885, %v1888
    %v1890 = vrot.slane %v1604, 4
    %v1891 = vsel %vm409, %v1890, %v1602
    %v1893 = vunpack.c.l.s4 1983009808
    %v1894 = vunpack.c.0.s8 %v1893
    %v1895 = vperm.slane %v1891, %v1894
    %v1896 = vsel %vm409, %v1607, %v1596
    %v1898 = vunpack.c.l.s4 1983009808
    %v1899 = vunpack.c.0.s8 %v1898
    %v1900 = vperm.slane %v1896, %v1899
    %v1901 = vrot.slane %v1608, 4
    %v1902 = vsel %vm409, %v1901, %v1606
    %v1904 = vunpack.c.l.s4 1983009808
    %v1905 = vunpack.c.0.s8 %v1904
    %v1906 = vperm.slane %v1902, %v1905
    %v1907 = vrot.slane %v1895, 4
    %v1908 = vsel %vm409, %v1907, %v1889
    %v1909 = vrot.slane %v1889, 4
    %v1910 = vsel %vm409, %v1895, %v1909
    %v1912 = vunpack.c.l.s4 1934713408
    %v1913 = vunpack.c.0.s8 %v1912
    %v1914 = vperm.slane %v1908, %v1913
    %v1916 = vunpack.c.l.s4 1934713408
    %v1917 = vunpack.c.0.s8 %v1916
    %v1918 = vperm.slane %v1910, %v1917
    %v1919 = vrot.slane %v1906, 4
    %v1920 = vsel %vm409, %v1919, %v1900
    %v1921 = vrot.slane %v1900, 4
    %v1922 = vsel %vm409, %v1906, %v1921
    %v1924 = vunpack.c.l.s4 1934713408
    %v1925 = vunpack.c.0.s8 %v1924
    %v1926 = vperm.slane %v1920, %v1925
    %v1928 = vunpack.c.l.s4 1934713408
    %v1929 = vunpack.c.0.s8 %v1928
    %v1930 = vperm.slane %v1922, %v1929
    %v1931 = vrot.slane %v1926, 4
    %v1932 = vsel %vm409, %v1931, %v1914
    %v1933 = vrot.slane %v1914, 4
    %v1934 = vsel %vm409, %v1926, %v1933
    %v1935 = vrot.slane %v1930, 4
    %v1936 = vsel %vm409, %v1935, %v1918
    %v1937 = vrot.slane %v1918, 4
    %v1938 = vsel %vm409, %v1930, %v1937
    %v1939 = vsel %vm409, %v1659, %v1640
    %v1941 = vunpack.c.l.s4 1983009808
    %v1942 = vunpack.c.0.s8 %v1941
    %v1943 = vperm.slane %v1939, %v1942
    %v1944 = vrot.slane %v1660, 4
    %v1945 = vsel %vm409, %v1944, %v1658
    %v1947 = vunpack.c.l.s4 1983009808
    %v1948 = vunpack.c.0.s8 %v1947
    %v1949 = vperm.slane %v1945, %v1948
    %v1950 = vsel %vm409, %v1663, %v1652
    %v1952 = vunpack.c.l.s4 1983009808
    %v1953 = vunpack.c.0.s8 %v1952
    %v1954 = vperm.slane %v1950, %v1953
    %v1955 = vrot.slane %v1664, 4
    %v1956 = vsel %vm409, %v1955, %v1662
    %v1958 = vunpack.c.l.s4 1983009808
    %v1959 = vunpack.c.0.s8 %v1958
    %v1960 = vperm.slane %v1956, %v1959
    %v1961 = vrot.slane %v1949, 4
    %v1962 = vsel %vm409, %v1961, %v1943
    %v1963 = vrot.slane %v1943, 4
    %v1964 = vsel %vm409, %v1949, %v1963
    %v1966 = vunpack.c.l.s4 1934713408
    %v1967 = vunpack.c.0.s8 %v1966
    %v1968 = vperm.slane %v1962, %v1967
    %v1970 = vunpack.c.l.s4 1934713408
    %v1971 = vunpack.c.0.s8 %v1970
    %v1972 = vperm.slane %v1964, %v1971
    %v1973 = vrot.slane %v1960, 4
    %v1974 = vsel %vm409, %v1973, %v1954
    %v1975 = vrot.slane %v1954, 4
    %v1976 = vsel %vm409, %v1960, %v1975
    %v1978 = vunpack.c.l.s4 1934713408
    %v1979 = vunpack.c.0.s8 %v1978
    %v1980 = vperm.slane %v1974, %v1979
    %v1982 = vunpack.c.l.s4 1934713408
    %v1983 = vunpack.c.0.s8 %v1982
    %v1984 = vperm.slane %v1976, %v1983
    %v1985 = vrot.slane %v1980, 4
    %v1986 = vsel %vm409, %v1985, %v1968
    %v1987 = vrot.slane %v1968, 4
    %v1988 = vsel %vm409, %v1980, %v1987
    %v1989 = vrot.slane %v1984, 4
    %v1990 = vsel %vm409, %v1989, %v1972
    %v1991 = vrot.slane %v1972, 4
    %v1992 = vsel %vm409, %v1984, %v1991
    %v1993 = vsel %vm409, %v1715, %v1696
    %v1995 = vunpack.c.l.s4 1983009808
    %v1996 = vunpack.c.0.s8 %v1995
    %v1997 = vperm.slane %v1993, %v1996
    %v1998 = vrot.slane %v1716, 4
    %v1999 = vsel %vm409, %v1998, %v1714
    %v2001 = vunpack.c.l.s4 1983009808
    %v2002 = vunpack.c.0.s8 %v2001
    %v2003 = vperm.slane %v1999, %v2002
    %v2004 = vsel %vm409, %v1719, %v1708
    %v2006 = vunpack.c.l.s4 1983009808
    %v2007 = vunpack.c.0.s8 %v2006
    %v2008 = vperm.slane %v2004, %v2007
    %v2009 = vrot.slane %v1720, 4
    %v2010 = vsel %vm409, %v2009, %v1718
    %v2012 = vunpack.c.l.s4 1983009808
    %v2013 = vunpack.c.0.s8 %v2012
    %v2014 = vperm.slane %v2010, %v2013
    %v2015 = vrot.slane %v2003, 4
    %v2016 = vsel %vm409, %v2015, %v1997
    %v2017 = vrot.slane %v1997, 4
    %v2018 = vsel %vm409, %v2003, %v2017
    %v2020 = vunpack.c.l.s4 1934713408
    %v2021 = vunpack.c.0.s8 %v2020
    %v2022 = vperm.slane %v2016, %v2021
    %v2024 = vunpack.c.l.s4 1934713408
    %v2025 = vunpack.c.0.s8 %v2024
    %v2026 = vperm.slane %v2018, %v2025
    %v2027 = vrot.slane %v2014, 4
    %v2028 = vsel %vm409, %v2027, %v2008
    %v2029 = vrot.slane %v2008, 4
    %v2030 = vsel %vm409, %v2014, %v2029
    %v2032 = vunpack.c.l.s4 1934713408
    %v2033 = vunpack.c.0.s8 %v2032
    %v2034 = vperm.slane %v2028, %v2033
    %v2036 = vunpack.c.l.s4 1934713408
    %v2037 = vunpack.c.0.s8 %v2036
    %v2038 = vperm.slane %v2030, %v2037
    %v2039 = vrot.slane %v2034, 4
    %v2040 = vsel %vm409, %v2039, %v2022
    %v2041 = vrot.slane %v2022, 4
    %v2042 = vsel %vm409, %v2034, %v2041
    %v2043 = vrot.slane %v2038, 4
    %v2044 = vsel %vm409, %v2043, %v2026
    %v2045 = vrot.slane %v2026, 4
    %v2046 = vsel %vm409, %v2038, %v2045
    %v2047 = vsel %vm409, %v1771, %v1752
    %v2049 = vunpack.c.l.s4 1983009808
    %v2050 = vunpack.c.0.s8 %v2049
    %v2051 = vperm.slane %v2047, %v2050
    %v2052 = vrot.slane %v1772, 4
    %v2053 = vsel %vm409, %v2052, %v1770
    %v2055 = vunpack.c.l.s4 1983009808
    %v2056 = vunpack.c.0.s8 %v2055
    %v2057 = vperm.slane %v2053, %v2056
    %v2058 = vsel %vm409, %v1775, %v1764
    %v2060 = vunpack.c.l.s4 1983009808
    %v2061 = vunpack.c.0.s8 %v2060
    %v2062 = vperm.slane %v2058, %v2061
    %v2063 = vrot.slane %v1776, 4
    %v2064 = vsel %vm409, %v2063, %v1774
    %v2066 = vunpack.c.l.s4 1983009808
    %v2067 = vunpack.c.0.s8 %v2066
    %v2068 = vperm.slane %v2064, %v2067
    %v2069 = vrot.slane %v2057, 4
    %v2070 = vsel %vm409, %v2069, %v2051
    %v2071 = vrot.slane %v2051, 4
    %v2072 = vsel %vm409, %v2057, %v2071
    %v2074 = vunpack.c.l.s4 1934713408
    %v2075 = vunpack.c.0.s8 %v2074
    %v2076 = vperm.slane %v2070, %v2075
    %v2078 = vunpack.c.l.s4 1934713408
    %v2079 = vunpack.c.0.s8 %v2078
    %v2080 = vperm.slane %v2072, %v2079
    %v2081 = vrot.slane %v2068, 4
    %v2082 = vsel %vm409, %v2081, %v2062
    %v2083 = vrot.slane %v2062, 4
    %v2084 = vsel %vm409, %v2068, %v2083
    %v2086 = vunpack.c.l.s4 1934713408
    %v2087 = vunpack.c.0.s8 %v2086
    %v2088 = vperm.slane %v2082, %v2087
    %v2090 = vunpack.c.l.s4 1934713408
    %v2091 = vunpack.c.0.s8 %v2090
    %v2092 = vperm.slane %v2084, %v2091
    %v2093 = vrot.slane %v2088, 4
    %v2094 = vsel %vm409, %v2093, %v2076
    %v2095 = vrot.slane %v2076, 4
    %v2096 = vsel %vm409, %v2088, %v2095
    %v2097 = vrot.slane %v2092, 4
    %v2098 = vsel %vm409, %v2097, %v2080
    %v2099 = vrot.slane %v2080, 4
    %v2100 = vsel %vm409, %v2092, %v2099
    %v2101 = vpack.c.bf16 %v1824, %v1824
    %v2102 = vpack.c.bf16 %v1878, %v1878
    %v2103 = vpack.c.bf16 %v1932, %v1932
    %v2104 = vpack.c.bf16 %v1826, %v1826
    %v2105 = vpack.c.bf16 %v1880, %v1880
    %v2106 = vpack.c.bf16 %v1934, %v1934
    %v2107 = vpack.c.bf16 %v1828, %v1828
    %v2108 = vpack.c.bf16 %v1882, %v1882
    %v2109 = vpack.c.bf16 %v1936, %v1936
    %v2110 = vpack.c.bf16 %v1830, %v1830
    %v2111 = vpack.c.bf16 %v1884, %v1884
    %v2112 = vpack.c.bf16 %v1938, %v1938
    %v2113 = vpack.c.bf16 %v1986, %v1986
    %v2114 = vpack.c.bf16 %v2040, %v2040
    %v2115 = vpack.c.bf16 %v2094, %v2094
    %v2116 = vpack.c.bf16 %v1988, %v1988
    %v2117 = vpack.c.bf16 %v2042, %v2042
    %v2118 = vpack.c.bf16 %v2096, %v2096
    %v2119 = vpack.c.bf16 %v1990, %v1990
    %v2120 = vpack.c.bf16 %v2044, %v2044
    %v2121 = vpack.c.bf16 %v2098, %v2098
    %v2122 = vpack.c.bf16 %v1992, %v1992
    %v2123 = vpack.c.bf16 %v2046, %v2046
    %v2124 = vpack.c.bf16 %v2100, %v2100
    %v2128 = vunpack.c.l.b16 %v1357
    %v2129 = vunpack.c.l.b16 %v1358
    %v2130 = vunpack.c.l.b16 %v1359
    %v2131 = vpack.c.b16 %v2129, %v2128
    %v2132 = vpack.c.b16 %v2130, %v2130
    %vm2133 = vcmask 261120
    %v2135 = vsel %vm2133, %v629, 0
    %v2138 = vsel %vm2133, %v2131, 0
    %v2141 = vsel %vm2133, %v2132, 0
    %2143 = vmatpush.bf16.xpose.msra.mxu0 0
    %2144 = vmatpush.bf16.xpose.msra.mxu0 0
    %2145 = vmatpush.bf16.xpose.msra.mxu0 0
    %2146 = vmatpush.bf16.xpose.msra.mxu0 0
    %2147 = vmatpush.bf16.xpose.msra.mxu0 0
    %2148 = vmatpush.bf16.xpose.msra.mxu0 0
    %2149 = vmatpush.bf16.xpose.msra.mxu0 %v2141
    %2150 = vmatpush.bf16.xpose.msra.mxu0 %v2138
    %2151 = vmatmul.bf16.gmra.mxu0 %v2135
    %v2152 = vpop.f32.mrf.mxu0
    %v2153 = vadd.f32 0.0, %v2152
    %v2154 = vpop.f32.mrf.mxu0
    %2155 = vdwg.mxu0
    %v2159 = vunpack.c.l.b16 %v1360
    %v2160 = vunpack.c.l.b16 %v1361
    %v2161 = vunpack.c.l.b16 %v1362
    %v2162 = vpack.c.b16 %v2160, %v2159
    %v2163 = vpack.c.b16 %v2161, %v2161
    %v2165 = vsel %vm2133, %v630, 0
    %v2168 = vsel %vm2133, %v2162, 0
    %v2171 = vsel %vm2133, %v2163, 0
    %2173 = vmatpush.bf16.xpose.msra.mxu0 0
    %2174 = vmatpush.bf16.xpose.msra.mxu0 0
    %2175 = vmatpush.bf16.xpose.msra.mxu0 0
    %2176 = vmatpush.bf16.xpose.msra.mxu0 0
    %2177 = vmatpush.bf16.xpose.msra.mxu0 0
    %2178 = vmatpush.bf16.xpose.msra.mxu0 0
    %2179 = vmatpush.bf16.xpose.msra.mxu0 %v2171
    %2180 = vmatpush.bf16.xpose.msra.mxu0 %v2168
    %2181 = vmatmul.bf16.gmra.mxu0 %v2165
    %v2182 = vpop.f32.mrf.mxu0
    %v2183 = vadd.f32 0.0, %v2182
    %v2184 = vpop.f32.mrf.mxu0
    %2185 = vdwg.mxu0
    %v2189 = vunpack.c.l.b16 %v1363
    %v2190 = vunpack.c.l.b16 %v1364
    %v2191 = vunpack.c.l.b16 %v1365
    %v2192 = vpack.c.b16 %v2190, %v2189
    %v2193 = vpack.c.b16 %v2191, %v2191
    %v2195 = vsel %vm2133, %v631, 0
    %v2198 = vsel %vm2133, %v2192, 0
    %v2201 = vsel %vm2133, %v2193, 0
    %2203 = vmatpush.bf16.xpose.msra.mxu0 0
    %2204 = vmatpush.bf16.xpose.msra.mxu0 0
    %2205 = vmatpush.bf16.xpose.msra.mxu0 0
    %2206 = vmatpush.bf16.xpose.msra.mxu0 0
    %2207 = vmatpush.bf16.xpose.msra.mxu0 0
    %2208 = vmatpush.bf16.xpose.msra.mxu0 0
    %2209 = vmatpush.bf16.xpose.msra.mxu0 %v2201
    %2210 = vmatpush.bf16.xpose.msra.mxu0 %v2198
    %2211 = vmatmul.bf16.gmra.mxu0 %v2195
    %v2212 = vpop.f32.mrf.mxu0
    %v2213 = vadd.f32 0.0, %v2212
    %v2214 = vpop.f32.mrf.mxu0
    %2215 = vdwg.mxu0
    %v2219 = vunpack.c.l.b16 %v1366
    %v2220 = vunpack.c.l.b16 %v1367
    %v2221 = vunpack.c.l.b16 %v1368
    %v2222 = vpack.c.b16 %v2220, %v2219
    %v2223 = vpack.c.b16 %v2221, %v2221
    %v2225 = vsel %vm2133, %v632, 0
    %v2228 = vsel %vm2133, %v2222, 0
    %v2231 = vsel %vm2133, %v2223, 0
    %2233 = vmatpush.bf16.xpose.msra.mxu0 0
    %2234 = vmatpush.bf16.xpose.msra.mxu0 0
    %2235 = vmatpush.bf16.xpose.msra.mxu0 0
    %2236 = vmatpush.bf16.xpose.msra.mxu0 0
    %2237 = vmatpush.bf16.xpose.msra.mxu0 0
    %2238 = vmatpush.bf16.xpose.msra.mxu0 0
    %2239 = vmatpush.bf16.xpose.msra.mxu0 %v2231
    %2240 = vmatpush.bf16.xpose.msra.mxu0 %v2228
    %2241 = vmatmul.bf16.gmra.mxu0 %v2225
    %v2242 = vpop.f32.mrf.mxu0
    %v2243 = vadd.f32 0.0, %v2242
    %v2244 = vpop.f32.mrf.mxu0
    %2245 = vdwg.mxu0
    %v2249 = vunpack.c.l.b16 %v1369
    %v2250 = vunpack.c.l.b16 %v1370
    %v2251 = vunpack.c.l.b16 %v1371
    %v2252 = vpack.c.b16 %v2250, %v2249
    %v2253 = vpack.c.b16 %v2251, %v2251
    %v2255 = vsel %vm2133, %v633, 0
    %v2258 = vsel %vm2133, %v2252, 0
    %v2261 = vsel %vm2133, %v2253, 0
    %2263 = vmatpush.bf16.xpose.msra.mxu0 0
    %2264 = vmatpush.bf16.xpose.msra.mxu0 0
    %2265 = vmatpush.bf16.xpose.msra.mxu0 0
    %2266 = vmatpush.bf16.xpose.msra.mxu0 0
    %2267 = vmatpush.bf16.xpose.msra.mxu0 0
    %2268 = vmatpush.bf16.xpose.msra.mxu0 0
    %2269 = vmatpush.bf16.xpose.msra.mxu0 %v2261
    %2270 = vmatpush.bf16.xpose.msra.mxu0 %v2258
    %2271 = vmatmul.bf16.gmra.mxu0 %v2255
    %v2272 = vpop.f32.mrf.mxu0
    %v2273 = vadd.f32 0.0, %v2272
    %v2274 = vpop.f32.mrf.mxu0
    %2275 = vdwg.mxu0
    %v2279 = vunpack.c.l.b16 %v1372
    %v2280 = vunpack.c.l.b16 %v1373
    %v2281 = vunpack.c.l.b16 %v1374
    %v2282 = vpack.c.b16 %v2280, %v2279
    %v2283 = vpack.c.b16 %v2281, %v2281
    %v2285 = vsel %vm2133, %v634, 0
    %v2288 = vsel %vm2133, %v2282, 0
    %v2291 = vsel %vm2133, %v2283, 0
    %2293 = vmatpush.bf16.xpose.msra.mxu0 0
    %2294 = vmatpush.bf16.xpose.msra.mxu0 0
    %2295 = vmatpush.bf16.xpose.msra.mxu0 0
    %2296 = vmatpush.bf16.xpose.msra.mxu0 0
    %2297 = vmatpush.bf16.xpose.msra.mxu0 0
    %2298 = vmatpush.bf16.xpose.msra.mxu0 0
    %2299 = vmatpush.bf16.xpose.msra.mxu0 %v2291
    %2300 = vmatpush.bf16.xpose.msra.mxu0 %v2288
    %2301 = vmatmul.bf16.gmra.mxu0 %v2285
    %v2302 = vpop.f32.mrf.mxu0
    %v2303 = vadd.f32 0.0, %v2302
    %v2304 = vpop.f32.mrf.mxu0
    %2305 = vdwg.mxu0
    %v2309 = vunpack.c.l.b16 %v1375
    %v2310 = vunpack.c.l.b16 %v1376
    %v2311 = vunpack.c.l.b16 %v1377
    %v2312 = vpack.c.b16 %v2310, %v2309
    %v2313 = vpack.c.b16 %v2311, %v2311
    %v2315 = vsel %vm2133, %v635, 0
    %v2318 = vsel %vm2133, %v2312, 0
    %v2321 = vsel %vm2133, %v2313, 0
    %2323 = vmatpush.bf16.xpose.msra.mxu0 0
    %2324 = vmatpush.bf16.xpose.msra.mxu0 0
    %2325 = vmatpush.bf16.xpose.msra.mxu0 0
    %2326 = vmatpush.bf16.xpose.msra.mxu0 0
    %2327 = vmatpush.bf16.xpose.msra.mxu0 0
    %2328 = vmatpush.bf16.xpose.msra.mxu0 0
    %2329 = vmatpush.bf16.xpose.msra.mxu0 %v2321
    %2330 = vmatpush.bf16.xpose.msra.mxu0 %v2318
    %2331 = vmatmul.bf16.gmra.mxu0 %v2315
    %v2332 = vpop.f32.mrf.mxu0
    %v2333 = vadd.f32 0.0, %v2332
    %v2334 = vpop.f32.mrf.mxu0
    %2335 = vdwg.mxu0
    %v2339 = vunpack.c.l.b16 %v1378
    %v2340 = vunpack.c.l.b16 %v1379
    %v2341 = vunpack.c.l.b16 %v1380
    %v2342 = vpack.c.b16 %v2340, %v2339
    %v2343 = vpack.c.b16 %v2341, %v2341
    %v2345 = vsel %vm2133, %v636, 0
    %v2348 = vsel %vm2133, %v2342, 0
    %v2351 = vsel %vm2133, %v2343, 0
    %2353 = vmatpush.bf16.xpose.msra.mxu0 0
    %2354 = vmatpush.bf16.xpose.msra.mxu0 0
    %2355 = vmatpush.bf16.xpose.msra.mxu0 0
    %2356 = vmatpush.bf16.xpose.msra.mxu0 0
    %2357 = vmatpush.bf16.xpose.msra.mxu0 0
    %2358 = vmatpush.bf16.xpose.msra.mxu0 0
    %2359 = vmatpush.bf16.xpose.msra.mxu0 %v2351
    %2360 = vmatpush.bf16.xpose.msra.mxu0 %v2348
    %2361 = vmatmul.bf16.gmra.mxu0 %v2345
    %v2362 = vpop.f32.mrf.mxu0
    %v2363 = vadd.f32 0.0, %v2362
    %v2364 = vpop.f32.mrf.mxu0
    %2365 = vdwg.mxu0
    %v2368 = vperm.slane %v40, 0
    %v2369 = vperm.slane %v41, 0
    %v2372 = vadd.f32 %v2153, %v2368
    %v2373 = vadd.f32 %v2183, %v2368
    %v2374 = vadd.f32 %v2213, %v2368
    %v2375 = vadd.f32 %v2243, %v2368
    %v2376 = vadd.f32 %v2273, %v2369
    %v2377 = vadd.f32 %v2303, %v2369
    %v2378 = vadd.f32 %v2333, %v2369
    %v2379 = vadd.f32 %v2363, %v2369
    %vm2380 = vcmask 195584
    %v2381 = vsel %vm2380, %v2372, -inf
    %2382 = vmax.xlane.f32.xlu0 %v2381
    %v2383 = vpop.xlane.xlu0 %2382
    %v2384 = vsel %vm2380, %v2373, -inf
    %2385 = vmax.xlane.f32.xlu0 %v2384
    %v2386 = vpop.xlane.xlu0 %2385
    %v2387 = vsel %vm2380, %v2374, -inf
    %2388 = vmax.xlane.f32.xlu0 %v2387
    %v2389 = vpop.xlane.xlu0 %2388
    %v2390 = vsel %vm2380, %v2375, -inf
    %2391 = vmax.xlane.f32.xlu0 %v2390
    %v2392 = vpop.xlane.xlu0 %2391
    %v2393 = vsel %vm2380, %v2376, -inf
    %2394 = vmax.xlane.f32.xlu0 %v2393
    %v2395 = vpop.xlane.xlu0 %2394
    %v2396 = vsel %vm2380, %v2377, -inf
    %2397 = vmax.xlane.f32.xlu0 %v2396
    %v2398 = vpop.xlane.xlu0 %2397
    %v2399 = vsel %vm2380, %v2378, -inf
    %2400 = vmax.xlane.f32.xlu0 %v2399
    %v2401 = vpop.xlane.xlu0 %2400
    %v2402 = vsel %vm2380, %v2379, -inf
    %2403 = vmax.xlane.f32.xlu0 %v2402
    %v2404 = vpop.xlane.xlu0 %2403
    %v2405 = vsub.f32 %v2372, %v2383
    %v2406 = vsub.f32 %v2373, %v2386
    %v2407 = vsub.f32 %v2374, %v2389
    %v2408 = vsub.f32 %v2375, %v2392
    %v2409 = vsub.f32 %v2376, %v2395
    %v2410 = vsub.f32 %v2377, %v2398
    %v2411 = vsub.f32 %v2378, %v2401
    %v2412 = vsub.f32 %v2379, %v2404
    %v2413 = vmul.f32 %v2405, 1.442695
    %v2414 = vpow.pop %v2413
    %v2415 = vmul.f32 %v2406, 1.442695
    %v2416 = vpow.pop %v2415
    %v2417 = vmul.f32 %v2407, 1.442695
    %v2418 = vpow.pop %v2417
    %v2419 = vmul.f32 %v2408, 1.442695
    %v2420 = vpow.pop %v2419
    %v2421 = vmul.f32 %v2409, 1.442695
    %v2422 = vpow.pop %v2421
    %v2423 = vmul.f32 %v2410, 1.442695
    %v2424 = vpow.pop %v2423
    %v2425 = vmul.f32 %v2411, 1.442695
    %v2426 = vpow.pop %v2425
    %v2427 = vmul.f32 %v2412, 1.442695
    %v2428 = vpow.pop %v2427
    %v2429 = vsel %vm2380, %v2414, 0.0
    %2430 = vadd.xlane.f32.xlu0 %v2429
    %v2431 = vpop.xlane.xlu0 %2430
    %v2432 = vsel %vm2380, %v2416, 0.0
    %2433 = vadd.xlane.f32.xlu0 %v2432
    %v2434 = vpop.xlane.xlu0 %2433
    %v2435 = vsel %vm2380, %v2418, 0.0
    %2436 = vadd.xlane.f32.xlu0 %v2435
    %v2437 = vpop.xlane.xlu0 %2436
    %v2438 = vsel %vm2380, %v2420, 0.0
    %2439 = vadd.xlane.f32.xlu0 %v2438
    %v2440 = vpop.xlane.xlu0 %2439
    %v2441 = vsel %vm2380, %v2422, 0.0
    %2442 = vadd.xlane.f32.xlu0 %v2441
    %v2443 = vpop.xlane.xlu0 %2442
    %v2444 = vsel %vm2380, %v2424, 0.0
    %2445 = vadd.xlane.f32.xlu0 %v2444
    %v2446 = vpop.xlane.xlu0 %2445
    %v2447 = vsel %vm2380, %v2426, 0.0
    %2448 = vadd.xlane.f32.xlu0 %v2447
    %v2449 = vpop.xlane.xlu0 %2448
    %v2450 = vsel %vm2380, %v2428, 0.0
    %2451 = vadd.xlane.f32.xlu0 %v2450
    %v2452 = vpop.xlane.xlu0 %2451
    %v2453 = vrcp.pop %v2431
    %v2454 = vrcp.pop %v2434
    %v2455 = vrcp.pop %v2437
    %v2456 = vrcp.pop %v2440
    %v2457 = vrcp.pop %v2443
    %v2458 = vrcp.pop %v2446
    %v2459 = vrcp.pop %v2449
    %v2460 = vrcp.pop %v2452
    %v2461 = vmul.f32 %v2414, %v2453
    %v2462 = vmul.f32 %v2416, %v2454
    %v2463 = vmul.f32 %v2418, %v2455
    %v2464 = vmul.f32 %v2420, %v2456
    %v2465 = vmul.f32 %v2422, %v2457
    %v2466 = vmul.f32 %v2424, %v2458
    %v2467 = vmul.f32 %v2426, %v2459
    %v2468 = vmul.f32 %v2428, %v2460
    %v2469 = vpack.c.bf16 %v2461, %v2461
    %v2470 = vpack.c.bf16 %v2462, %v2462
    %v2471 = vpack.c.bf16 %v2463, %v2463
    %v2472 = vpack.c.bf16 %v2464, %v2464
    %v2473 = vpack.c.bf16 %v2465, %v2465
    %v2474 = vpack.c.bf16 %v2466, %v2466
    %v2475 = vpack.c.bf16 %v2467, %v2467
    %v2476 = vpack.c.bf16 %v2468, %v2468
    %v2480 = vunpack.c.l.b16 %v2101
    %v2481 = vunpack.c.l.b16 %v2102
    %v2482 = vunpack.c.l.b16 %v2103
    %v2483 = vpack.c.b16 %v2481, %v2480
    %v2484 = vpack.c.b16 %v2482, %v2482
    %v2487 = vsel %vm2380, %v2469, 0
    %vm2489 = vcmask 1043456
    %v2491 = vsel %vm2489, %v2484, 0
    %2493 = vmatpush.bf16.msra.mxu0 0
    %2494 = vmatpush.bf16.msra.mxu0 0
    %2495 = vmatpush.bf16.msra.mxu0 0
    %2496 = vmatpush.bf16.msra.mxu0 0
    %2497 = vmatpush.bf16.msra.mxu0 0
    %2498 = vmatpush.bf16.msra.mxu0 0
    %2499 = vmatpush.bf16.msra.mxu0 %v2491
    %2500 = vmatpush.bf16.msra.mxu0 %v2483
    %2501 = vmatmul.bf16.gmra.mxu0 %v2487
    %v2502 = vpop.f32.mrf.mxu0
    %v2503 = vadd.f32 0.0, %v2502
    %v2504 = vpop.f32.mrf.mxu0
    %2505 = vdwg.mxu0
    %v2509 = vunpack.c.l.b16 %v2104
    %v2510 = vunpack.c.l.b16 %v2105
    %v2511 = vunpack.c.l.b16 %v2106
    %v2512 = vpack.c.b16 %v2510, %v2509
    %v2513 = vpack.c.b16 %v2511, %v2511
    %v2516 = vsel %vm2380, %v2470, 0
    %v2519 = vsel %vm2489, %v2513, 0
    %2521 = vmatpush.bf16.msra.mxu0 0
    %2522 = vmatpush.bf16.msra.mxu0 0
    %2523 = vmatpush.bf16.msra.mxu0 0
    %2524 = vmatpush.bf16.msra.mxu0 0
    %2525 = vmatpush.bf16.msra.mxu0 0
    %2526 = vmatpush.bf16.msra.mxu0 0
    %2527 = vmatpush.bf16.msra.mxu0 %v2519
    %2528 = vmatpush.bf16.msra.mxu0 %v2512
    %2529 = vmatmul.bf16.gmra.mxu0 %v2516
    %v2530 = vpop.f32.mrf.mxu0
    %v2531 = vadd.f32 0.0, %v2530
    %v2532 = vpop.f32.mrf.mxu0
    %2533 = vdwg.mxu0
    %v2537 = vunpack.c.l.b16 %v2107
    %v2538 = vunpack.c.l.b16 %v2108
    %v2539 = vunpack.c.l.b16 %v2109
    %v2540 = vpack.c.b16 %v2538, %v2537
    %v2541 = vpack.c.b16 %v2539, %v2539
    %v2544 = vsel %vm2380, %v2471, 0
    %v2547 = vsel %vm2489, %v2541, 0
    %2549 = vmatpush.bf16.msra.mxu0 0
    %2550 = vmatpush.bf16.msra.mxu0 0
    %2551 = vmatpush.bf16.msra.mxu0 0
    %2552 = vmatpush.bf16.msra.mxu0 0
    %2553 = vmatpush.bf16.msra.mxu0 0
    %2554 = vmatpush.bf16.msra.mxu0 0
    %2555 = vmatpush.bf16.msra.mxu0 %v2547
    %2556 = vmatpush.bf16.msra.mxu0 %v2540
    %2557 = vmatmul.bf16.gmra.mxu0 %v2544
    %v2558 = vpop.f32.mrf.mxu0
    %v2559 = vadd.f32 0.0, %v2558
    %v2560 = vpop.f32.mrf.mxu0
    %2561 = vdwg.mxu0
    %v2565 = vunpack.c.l.b16 %v2110
    %v2566 = vunpack.c.l.b16 %v2111
    %v2567 = vunpack.c.l.b16 %v2112
    %v2568 = vpack.c.b16 %v2566, %v2565
    %v2569 = vpack.c.b16 %v2567, %v2567
    %v2572 = vsel %vm2380, %v2472, 0
    %v2575 = vsel %vm2489, %v2569, 0
    %2577 = vmatpush.bf16.msra.mxu0 0
    %2578 = vmatpush.bf16.msra.mxu0 0
    %2579 = vmatpush.bf16.msra.mxu0 0
    %2580 = vmatpush.bf16.msra.mxu0 0
    %2581 = vmatpush.bf16.msra.mxu0 0
    %2582 = vmatpush.bf16.msra.mxu0 0
    %2583 = vmatpush.bf16.msra.mxu0 %v2575
    %2584 = vmatpush.bf16.msra.mxu0 %v2568
    %2585 = vmatmul.bf16.gmra.mxu0 %v2572
    %v2586 = vpop.f32.mrf.mxu0
    %v2587 = vadd.f32 0.0, %v2586
    %v2588 = vpop.f32.mrf.mxu0
    %2589 = vdwg.mxu0
    %v2593 = vunpack.c.l.b16 %v2113
    %v2594 = vunpack.c.l.b16 %v2114
    %v2595 = vunpack.c.l.b16 %v2115
    %v2596 = vpack.c.b16 %v2594, %v2593
    %v2597 = vpack.c.b16 %v2595, %v2595
    %v2600 = vsel %vm2380, %v2473, 0
    %v2603 = vsel %vm2489, %v2597, 0
    %2605 = vmatpush.bf16.msra.mxu0 0
    %2606 = vmatpush.bf16.msra.mxu0 0
    %2607 = vmatpush.bf16.msra.mxu0 0
    %2608 = vmatpush.bf16.msra.mxu0 0
    %2609 = vmatpush.bf16.msra.mxu0 0
    %2610 = vmatpush.bf16.msra.mxu0 0
    %2611 = vmatpush.bf16.msra.mxu0 %v2603
    %2612 = vmatpush.bf16.msra.mxu0 %v2596
    %2613 = vmatmul.bf16.gmra.mxu0 %v2600
    %v2614 = vpop.f32.mrf.mxu0
    %v2615 = vadd.f32 0.0, %v2614
    %v2616 = vpop.f32.mrf.mxu0
    %2617 = vdwg.mxu0
    %v2621 = vunpack.c.l.b16 %v2116
    %v2622 = vunpack.c.l.b16 %v2117
    %v2623 = vunpack.c.l.b16 %v2118
    %v2624 = vpack.c.b16 %v2622, %v2621
    %v2625 = vpack.c.b16 %v2623, %v2623
    %v2628 = vsel %vm2380, %v2474, 0
    %v2631 = vsel %vm2489, %v2625, 0
    %2633 = vmatpush.bf16.msra.mxu0 0
    %2634 = vmatpush.bf16.msra.mxu0 0
    %2635 = vmatpush.bf16.msra.mxu0 0
    %2636 = vmatpush.bf16.msra.mxu0 0
    %2637 = vmatpush.bf16.msra.mxu0 0
    %2638 = vmatpush.bf16.msra.mxu0 0
    %2639 = vmatpush.bf16.msra.mxu0 %v2631
    %2640 = vmatpush.bf16.msra.mxu0 %v2624
    %2641 = vmatmul.bf16.gmra.mxu0 %v2628
    %v2642 = vpop.f32.mrf.mxu0
    %v2643 = vadd.f32 0.0, %v2642
    %v2644 = vpop.f32.mrf.mxu0
    %2645 = vdwg.mxu0
    %v2649 = vunpack.c.l.b16 %v2119
    %v2650 = vunpack.c.l.b16 %v2120
    %v2651 = vunpack.c.l.b16 %v2121
    %v2652 = vpack.c.b16 %v2650, %v2649
    %v2653 = vpack.c.b16 %v2651, %v2651
    %v2656 = vsel %vm2380, %v2475, 0
    %v2659 = vsel %vm2489, %v2653, 0
    %2661 = vmatpush.bf16.msra.mxu0 0
    %2662 = vmatpush.bf16.msra.mxu0 0
    %2663 = vmatpush.bf16.msra.mxu0 0
    %2664 = vmatpush.bf16.msra.mxu0 0
    %2665 = vmatpush.bf16.msra.mxu0 0
    %2666 = vmatpush.bf16.msra.mxu0 0
    %2667 = vmatpush.bf16.msra.mxu0 %v2659
    %2668 = vmatpush.bf16.msra.mxu0 %v2652
    %2669 = vmatmul.bf16.gmra.mxu0 %v2656
    %v2670 = vpop.f32.mrf.mxu0
    %v2671 = vadd.f32 0.0, %v2670
    %v2672 = vpop.f32.mrf.mxu0
    %2673 = vdwg.mxu0
    %v2677 = vunpack.c.l.b16 %v2122
    %v2678 = vunpack.c.l.b16 %v2123
    %v2679 = vunpack.c.l.b16 %v2124
    %v2680 = vpack.c.b16 %v2678, %v2677
    %v2681 = vpack.c.b16 %v2679, %v2679
    %v2684 = vsel %vm2380, %v2476, 0
    %v2687 = vsel %vm2489, %v2681, 0
    %2689 = vmatpush.bf16.msra.mxu0 0
    %2690 = vmatpush.bf16.msra.mxu0 0
    %2691 = vmatpush.bf16.msra.mxu0 0
    %2692 = vmatpush.bf16.msra.mxu0 0
    %2693 = vmatpush.bf16.msra.mxu0 0
    %2694 = vmatpush.bf16.msra.mxu0 0
    %2695 = vmatpush.bf16.msra.mxu0 %v2687
    %2696 = vmatpush.bf16.msra.mxu0 %v2680
    %2697 = vmatmul.bf16.gmra.mxu0 %v2684
    %v2698 = vpop.f32.mrf.mxu0
    %v2699 = vadd.f32 0.0, %v2698
    %v2700 = vpop.f32.mrf.mxu0
    %2701 = vdwg.mxu0
    %v2702 = vrot.slane %v2559, 4
    %v2703 = vsel %vm409, %v2702, %v2503
    %v2704 = vrot.slane %v2503, 4
    %v2705 = vsel %vm409, %v2559, %v2704
    %v2707 = vunpack.c.l.s4 1983009808
    %v2708 = vunpack.c.0.s8 %v2707
    %v2709 = vperm.slane %v2703, %v2708
    %v2711 = vunpack.c.l.s4 1983009808
    %v2712 = vunpack.c.0.s8 %v2711
    %v2713 = vperm.slane %v2705, %v2712
    %v2714 = vrot.slane %v2587, 4
    %v2715 = vsel %vm409, %v2714, %v2531
    %v2716 = vrot.slane %v2531, 4
    %v2717 = vsel %vm409, %v2587, %v2716
    %v2719 = vunpack.c.l.s4 1983009808
    %v2720 = vunpack.c.0.s8 %v2719
    %v2721 = vperm.slane %v2715, %v2720
    %v2723 = vunpack.c.l.s4 1983009808
    %v2724 = vunpack.c.0.s8 %v2723
    %v2725 = vperm.slane %v2717, %v2724
    %v2726 = vrot.slane %v2721, 4
    %v2727 = vsel %vm409, %v2726, %v2709
    %v2728 = vrot.slane %v2709, 4
    %v2729 = vsel %vm409, %v2721, %v2728
    %v2731 = vunpack.c.l.s4 1934713408
    %v2732 = vunpack.c.0.s8 %v2731
    %v2733 = vperm.slane %v2727, %v2732
    %v2735 = vunpack.c.l.s4 1934713408
    %v2736 = vunpack.c.0.s8 %v2735
    %v2737 = vperm.slane %v2729, %v2736
    %v2738 = vrot.slane %v2725, 4
    %v2739 = vsel %vm409, %v2738, %v2713
    %v2740 = vrot.slane %v2713, 4
    %v2741 = vsel %vm409, %v2725, %v2740
    %v2743 = vunpack.c.l.s4 1934713408
    %v2744 = vunpack.c.0.s8 %v2743
    %v2745 = vperm.slane %v2739, %v2744
    %v2747 = vunpack.c.l.s4 1934713408
    %v2748 = vunpack.c.0.s8 %v2747
    %v2749 = vperm.slane %v2741, %v2748
    %v2750 = vrot.slane %v2733, 4
    %v2751 = vsel %vm409, 0.0, %v2750
    %v2752 = vrot.slane %v2737, 4
    %v2753 = vsel %vm409, 0.0, %v2752
    %v2754 = vrot.slane %v2745, 4
    %v2755 = vsel %vm409, 0.0, %v2754
    %v2756 = vrot.slane %v2749, 4
    %v2757 = vsel %vm409, 0.0, %v2756
    %v2758 = vrot.slane %v2671, 4
    %v2759 = vsel %vm409, %v2758, %v2615
    %v2760 = vrot.slane %v2615, 4
    %v2761 = vsel %vm409, %v2671, %v2760
    %v2763 = vunpack.c.l.s4 1983009808
    %v2764 = vunpack.c.0.s8 %v2763
    %v2765 = vperm.slane %v2759, %v2764
    %v2767 = vunpack.c.l.s4 1983009808
    %v2768 = vunpack.c.0.s8 %v2767
    %v2769 = vperm.slane %v2761, %v2768
    %v2770 = vrot.slane %v2699, 4
    %v2771 = vsel %vm409, %v2770, %v2643
    %v2772 = vrot.slane %v2643, 4
    %v2773 = vsel %vm409, %v2699, %v2772
    %v2775 = vunpack.c.l.s4 1983009808
    %v2776 = vunpack.c.0.s8 %v2775
    %v2777 = vperm.slane %v2771, %v2776
    %v2779 = vunpack.c.l.s4 1983009808
    %v2780 = vunpack.c.0.s8 %v2779
    %v2781 = vperm.slane %v2773, %v2780
    %v2782 = vrot.slane %v2777, 4
    %v2783 = vsel %vm409, %v2782, %v2765
    %v2784 = vrot.slane %v2765, 4
    %v2785 = vsel %vm409, %v2777, %v2784
    %v2787 = vunpack.c.l.s4 1934713408
    %v2788 = vunpack.c.0.s8 %v2787
    %v2789 = vperm.slane %v2783, %v2788
    %v2791 = vunpack.c.l.s4 1934713408
    %v2792 = vunpack.c.0.s8 %v2791
    %v2793 = vperm.slane %v2785, %v2792
    %v2794 = vrot.slane %v2781, 4
    %v2795 = vsel %vm409, %v2794, %v2769
    %v2796 = vrot.slane %v2769, 4
    %v2797 = vsel %vm409, %v2781, %v2796
    %v2799 = vunpack.c.l.s4 1934713408
    %v2800 = vunpack.c.0.s8 %v2799
    %v2801 = vperm.slane %v2795, %v2800
    %v2803 = vunpack.c.l.s4 1934713408
    %v2804 = vunpack.c.0.s8 %v2803
    %v2805 = vperm.slane %v2797, %v2804
    %v2806 = vrot.slane %v2789, 4
    %v2807 = vsel %vm409, 0.0, %v2806
    %v2808 = vrot.slane %v2793, 4
    %v2809 = vsel %vm409, 0.0, %v2808
    %v2810 = vrot.slane %v2801, 4
    %v2811 = vsel %vm409, 0.0, %v2810
    %v2812 = vrot.slane %v2805, 4
    %v2813 = vsel %vm409, 0.0, %v2812
    %v2814 = vsel %vm409, %v2752, %v2733
    %v2816 = vunpack.c.l.s4 1983009808
    %v2817 = vunpack.c.0.s8 %v2816
    %v2818 = vperm.slane %v2814, %v2817
    %v2819 = vrot.slane %v2753, 4
    %v2820 = vsel %vm409, %v2819, %v2751
    %v2822 = vunpack.c.l.s4 1983009808
    %v2823 = vunpack.c.0.s8 %v2822
    %v2824 = vperm.slane %v2820, %v2823
    %v2825 = vsel %vm409, %v2756, %v2745
    %v2827 = vunpack.c.l.s4 1983009808
    %v2828 = vunpack.c.0.s8 %v2827
    %v2829 = vperm.slane %v2825, %v2828
    %v2830 = vrot.slane %v2757, 4
    %v2831 = vsel %vm409, %v2830, %v2755
    %v2833 = vunpack.c.l.s4 1983009808
    %v2834 = vunpack.c.0.s8 %v2833
    %v2835 = vperm.slane %v2831, %v2834
    %v2836 = vrot.slane %v2824, 4
    %v2837 = vsel %vm409, %v2836, %v2818
    %v2838 = vrot.slane %v2818, 4
    %v2839 = vsel %vm409, %v2824, %v2838
    %v2841 = vunpack.c.l.s4 1934713408
    %v2842 = vunpack.c.0.s8 %v2841
    %v2843 = vperm.slane %v2837, %v2842
    %v2845 = vunpack.c.l.s4 1934713408
    %v2846 = vunpack.c.0.s8 %v2845
    %v2847 = vperm.slane %v2839, %v2846
    %v2848 = vrot.slane %v2835, 4
    %v2849 = vsel %vm409, %v2848, %v2829
    %v2850 = vrot.slane %v2829, 4
    %v2851 = vsel %vm409, %v2835, %v2850
    %v2853 = vunpack.c.l.s4 1934713408
    %v2854 = vunpack.c.0.s8 %v2853
    %v2855 = vperm.slane %v2849, %v2854
    %v2857 = vunpack.c.l.s4 1934713408
    %v2858 = vunpack.c.0.s8 %v2857
    %v2859 = vperm.slane %v2851, %v2858
    %v2860 = vrot.slane %v2855, 4
    %v2861 = vsel %vm409, %v2860, %v2843
    %v2862 = vrot.slane %v2843, 4
    %v2863 = vsel %vm409, %v2855, %v2862
    %v2864 = vrot.slane %v2859, 4
    %v2865 = vsel %vm409, %v2864, %v2847
    %v2866 = vrot.slane %v2847, 4
    %v2867 = vsel %vm409, %v2859, %v2866
    %v2868 = vsel %vm409, %v2808, %v2789
    %v2870 = vunpack.c.l.s4 1983009808
    %v2871 = vunpack.c.0.s8 %v2870
    %v2872 = vperm.slane %v2868, %v2871
    %v2873 = vrot.slane %v2809, 4
    %v2874 = vsel %vm409, %v2873, %v2807
    %v2876 = vunpack.c.l.s4 1983009808
    %v2877 = vunpack.c.0.s8 %v2876
    %v2878 = vperm.slane %v2874, %v2877
    %v2879 = vsel %vm409, %v2812, %v2801
    %v2881 = vunpack.c.l.s4 1983009808
    %v2882 = vunpack.c.0.s8 %v2881
    %v2883 = vperm.slane %v2879, %v2882
    %v2884 = vrot.slane %v2813, 4
    %v2885 = vsel %vm409, %v2884, %v2811
    %v2887 = vunpack.c.l.s4 1983009808
    %v2888 = vunpack.c.0.s8 %v2887
    %v2889 = vperm.slane %v2885, %v2888
    %v2890 = vrot.slane %v2878, 4
    %v2891 = vsel %vm409, %v2890, %v2872
    %v2892 = vrot.slane %v2872, 4
    %v2893 = vsel %vm409, %v2878, %v2892
    %v2895 = vunpack.c.l.s4 1934713408
    %v2896 = vunpack.c.0.s8 %v2895
    %v2897 = vperm.slane %v2891, %v2896
    %v2899 = vunpack.c.l.s4 1934713408
    %v2900 = vunpack.c.0.s8 %v2899
    %v2901 = vperm.slane %v2893, %v2900
    %v2902 = vrot.slane %v2889, 4
    %v2903 = vsel %vm409, %v2902, %v2883
    %v2904 = vrot.slane %v2883, 4
    %v2905 = vsel %vm409, %v2889, %v2904
    %v2907 = vunpack.c.l.s4 1934713408
    %v2908 = vunpack.c.0.s8 %v2907
    %v2909 = vperm.slane %v2903, %v2908
    %v2911 = vunpack.c.l.s4 1934713408
    %v2912 = vunpack.c.0.s8 %v2911
    %v2913 = vperm.slane %v2905, %v2912
    %v2914 = vrot.slane %v2909, 4
    %v2915 = vsel %vm409, %v2914, %v2897
    %v2916 = vrot.slane %v2897, 4
    %v2917 = vsel %vm409, %v2909, %v2916
    %v2918 = vrot.slane %v2913, 4
    %v2919 = vsel %vm409, %v2918, %v2901
    %v2920 = vrot.slane %v2901, 4
    %v2921 = vsel %vm409, %v2913, %v2920
    %2924 = vrot.lane.b32.xlu0 %v2863, 32
    %v2925 = vpop.permute.xlu0 %2924
    %2926 = vrot.lane.b32.xlu0 %v2917, 32
    %v2927 = vpop.permute.xlu0 %2926
    %2932 = vrot.lane.b32.xlu0 %v2865, 64
    %v2933 = vpop.permute.xlu0 %2932
    %2934 = vrot.lane.b32.xlu0 %v2919, 64
    %v2935 = vpop.permute.xlu0 %2934
    %2940 = vrot.lane.b32.xlu0 %v2867, 96
    %v2941 = vpop.permute.xlu0 %2940
    %2942 = vrot.lane.b32.xlu0 %v2921, 96
    %v2943 = vpop.permute.xlu0 %2942
    %v2946 = vsel %vm2133, %v2861, %v2925
    %v2947 = vsel %vm2133, %v2915, %v2927
    %v2948 = vsel %vm44, %v2946, %v2933
    %v2949 = vsel %vm44, %v2947, %v2935
    %vm2950 = vcmask 785408
    %v2951 = vsel %vm2950, %v2948, %v2941
    %v2952 = vsel %vm2950, %v2949, %v2943
    %v2953 = vpack.c.bf16 %v2952, %v2951
    %v2954 = vld [vmem:[%s8] sm:$0xf]
    %v2955 = vld [vmem:[%s8 + $0x4] sm:$0xf]
    %v2956 = vld [vmem:[%s8 + $0x8] sm:$0xf]
    %v2957 = vld [vmem:[%s8 + $0xc] sm:$0xf]
    %v2958 = vld [vmem:[%s8 + $0x10] sm:$0xf]
    %v2959 = vld [vmem:[%s8 + $0x14] sm:$0xf]
    %v2960 = vld [vmem:[%s8 + $0x18] sm:$0xf]
    %v2961 = vld [vmem:[%s8 + $0x1c] sm:$0xf]
    %v2962 = vld [vmem:[%s8 + $0x20] sm:$0xf]
    %v2963 = vld [vmem:[%s8 + $0x24] sm:$0xf]
    %v2964 = vld [vmem:[%s8 + $0x28] sm:$0xf]
    %v2965 = vld [vmem:[%s8 + $0x2c] sm:$0xf]
    %v2966 = vld [vmem:[%s8 + $0x30] sm:$0xf]
    %v2967 = vld [vmem:[%s8 + $0x34] sm:$0xf]
    %v2968 = vld [vmem:[%s8 + $0x38] sm:$0xf]
    %v2969 = vld [vmem:[%s8 + $0x3c] sm:$0xf]
    %v2986 = vunpack.c.l.b16 %v2954
    %v2987 = vunpack.c.l.b16 %v2955
    %v2988 = vunpack.c.l.b16 %v2956
    %v2989 = vunpack.c.l.b16 %v2957
    %v2990 = vunpack.c.l.b16 %v2958
    %v2991 = vunpack.c.l.b16 %v2959
    %v2992 = vunpack.c.l.b16 %v2960
    %v2993 = vunpack.c.l.b16 %v2961
    %v2994 = vunpack.c.l.b16 %v2962
    %v2995 = vunpack.c.l.b16 %v2963
    %v2996 = vunpack.c.l.b16 %v2964
    %v2997 = vunpack.c.l.b16 %v2965
    %v2998 = vunpack.c.l.b16 %v2966
    %v2999 = vunpack.c.l.b16 %v2967
    %v3000 = vunpack.c.l.b16 %v2968
    %v3001 = vunpack.c.l.b16 %v2969
    %v3002 = vpack.c.b16 %v2987, %v2986
    %v3003 = vpack.c.b16 %v2989, %v2988
    %v3004 = vpack.c.b16 %v2991, %v2990
    %v3005 = vpack.c.b16 %v2993, %v2992
    %v3006 = vpack.c.b16 %v2995, %v2994
    %v3007 = vpack.c.b16 %v2997, %v2996
    %v3008 = vpack.c.b16 %v2999, %v2998
    %v3009 = vpack.c.b16 %v3001, %v3000
    %3018 = vmatpush.bf16.msra.mxu0 %v3009
    %3019 = vmatpush.bf16.msra.mxu0 %v3008
    %3020 = vmatpush.bf16.msra.mxu0 %v3007
    %3021 = vmatpush.bf16.msra.mxu0 %v3006
    %3022 = vmatpush.bf16.msra.mxu0 %v3005
    %3023 = vmatpush.bf16.msra.mxu0 %v3004
    %3024 = vmatpush.bf16.msra.mxu0 %v3003
    %3025 = vmatpush.bf16.msra.mxu0 %v3002
    %3026 = vmatmul.bf16.gmra.mxu0 %v2953
    %v3027 = vpop.f32.mrf.mxu0
    %v3028 = vadd.f32 0.0, %v3027
    %v3029 = vpop.f32.mrf.mxu0
    %v3030 = vadd.f32 0.0, %v3029
    %3031 = vdwg.mxu0
    %3032 = vst.msk [vmem:[#allocation2] sm:$0xff] %vm44, %v3028
    %3033 = vst.msk [vmem:[#allocation2 + $0x8] sm:$0xff] %vm44, %v3030
    // Predicated region
    $region38: #{perceiver_attention.1} parent=1 // pred_check
      _
    $region39: #{perceiver_attention.1} parent=1 // pred_check_branch
      %3035 = sbr.rel (0) target = $region41
    $region40: #{perceiver_attention.1} parent=1 // pred_region
      %3037 = vsyncadd [#allocation3], 0
      %s3038 = sshll.u32 [#allocation2], 4
      %s3039 = int_to_ptr.vmem [resolvable:$true] %s3038
      %s3040 = sshll.u32 %s9, 4
      %s3041 = int_to_ptr.hbm [resolvable:$true] %s3040
      %3046 = dma.vmem_to_hbm [thread:$0]  %s3039, 256, %s3041, [#allocation3], 128, 128, 8
    $region41: #{perceiver_attention.1} parent=1 // pred_fallthru
      _
    // Predicated region
    $region42: #{perceiver_attention.1} parent=1 // pred_check
      _
    $region43: #{perceiver_attention.1} parent=1 // pred_check_branch
      %3048 = sbr.rel (0) target = $region45
    $region44: #{perceiver_attention.1} parent=1 // pred_region
      %3050 = dma.done [#allocation3], 256
    $region45: #{perceiver_attention.1} parent=1 // pred_fallthru
      _
    %3051 = vsyncpa [#allocation3], 1

</llo_original>
